<compile_context>
chip_gen: v7x
topology: tpu7x:2x2x1
jax: 0.10.0
libtpu: 0.0.40
codegen_flags: <defaults>
</compile_context>

<pallas_src>
import functools

import jax
import jax.numpy as jnp
from jax.experimental import pallas as pl
from jax.experimental.pallas import tpu as pltpu


# ---------------------------------------------------------------------------
# Fused last-layer kernel.
# Grid: (i = root-row tile, k = inner-node / contraction tile), k innermost.
# ---------------------------------------------------------------------------
def _sage_out_kernel(adj_ref,   # [tm, tk]      bf16  adjacency tile (layer L-1)
                     h_ref,     # [tk, nhid]    bf16  precomputed H = X_fs @ W + b
                     s_ref,     # [tm, nhid]    bf16  precomputed relu(H[prev_idx])
                     wS_ref,    # [nhid, c_pad] bf16  gc_out weight, root half
                     wA_ref,    # [nhid, c_pad] bf16  gc_out weight, aggregate half
                     bout_ref,  # [1, c_pad]    f32   gc_out bias (lane-padded)
                     out_ref,   # [tm, c_pad]   f32   padded logits
                     acc_ref):  # VMEM f32 [tm, nhid] accumulator for adj @ H
    k = pl.program_id(1)

    @pl.when(k == 0)
    def _init():
        acc_ref[...] = jnp.zeros_like(acc_ref)

    # Hot loop: one MXU matmul per grid step, bf16 inputs, f32 accumulation.
    # (Bias is already folded into H, so sum_k adj[:,k] @ H[k] == adj @ (XW + b).)
    acc_ref[...] += jnp.dot(adj_ref[...], h_ref[...],
                            preferred_element_type=jnp.float32)

    @pl.when(k == pl.num_programs(1) - 1)
    def _finalize():
        # relu(concat([s, a], 1)) @ W_out == relu(s) @ W_out[:nh] + relu(a) @ W_out[nh:]
        # relu(s) was precomputed outside; only relu(a) and the two small output
        # projections run here (once per row tile).
        a_r = jnp.maximum(acc_ref[...], 0.0).astype(jnp.bfloat16)
        logits = (jnp.dot(s_ref[...], wS_ref[...], preferred_element_type=jnp.float32)
                  + jnp.dot(a_r, wA_ref[...], preferred_element_type=jnp.float32)
                  + bout_ref[...])
        out_ref[...] = logits                     # lane-dense (c_pad % 128 == 0) store


# ---------------------------------------------------------------------------
# Wrapper: dead-layer elimination + cheap XLA pre-projection + one pallas_call.
# ---------------------------------------------------------------------------
@functools.partial(jax.jit, static_argnames=("block_m", "block_k"))
def graphsage_second_forward(params, X, adjs, previous_indices, *,
                             block_m=256, block_k=256):
    f32, bf16 = jnp.float32, jnp.bfloat16
    N, nfeat = X.shape
    L = len(params["sage_w"])
    nhid = params["sage_w"][0].shape[1]
    num_classes = params["out_w"].shape[1]

    # Reference forward feeds X_fs to every conv layer; for L > 1 this requires
    # nfeat == 2*nhid (per-layer input dims). Only layer L-1 reaches gc_out.
    assert all(w.shape[0] == nfeat for w in params["sage_w"])
    if L > 1:
        assert nfeat == 2 * nhid
    assert nhid % 128 == 0, "demo assumes nhid is a multiple of 128 (lane width)"

    tm = min(block_m, N)
    tk = min(block_k, N)
    assert N % tm == 0 and N % tk == 0, "demo assumes N divisible by the tile sizes"

    # --- cheap XLA-side precompute (all O(N*nfeat*nhid), done once) ----------
    gate = jax.nn.sigmoid(params["fs_w"].astype(f32)).reshape(1, nfeat)
    Xg = X.astype(f32) * gate                                            # X_fs

    W_last = params["sage_w"][L - 1].astype(f32)
    b_last = params["sage_b"][L - 1].astype(f32).reshape(1, nhid)

    # Inner-node projection, hoisted out of the grid (bias folded in).
    H = (jnp.dot(Xg.astype(bf16), W_last.astype(bf16),
                 preferred_element_type=f32) + b_last)                   # [N, nhid] f32
    H_bf = H.astype(bf16)

    # Root-row half: gather (pure data movement, XLA) + projection + relu.
    Xsel = jnp.take(Xg, previous_indices[L - 1], axis=0)                 # [N, nfeat]
    S = (jnp.dot(Xsel.astype(bf16), W_last.astype(bf16),
                 preferred_element_type=f32) + b_last)
    S_bf = jnp.maximum(S, 0.0).astype(bf16)                              # relu(s), [N, nhid]

    # gc_out split into the two halves of the implicit concat, lane-padded, bf16.
    c_pad = ((num_classes + 127) // 128) * 128
    out_w = params["out_w"].astype(f32)                                  # [2*nhid, C]
    wS = jnp.zeros((nhid, c_pad), bf16).at[:, :num_classes].set(out_w[:nhid].astype(bf16))
    wA = jnp.zeros((nhid, c_pad), bf16).at[:, :num_classes].set(out_w[nhid:].astype(bf16))
    bout = jnp.zeros((1, c_pad), f32).at[:, :num_classes].set(
        params["out_b"].astype(f32).reshape(1, -1))

    # Dead-layer elimination: only the last layer's adjacency is streamed, bf16.
    adj_last = jnp.asarray(adjs)[L - 1].astype(bf16)                     # [N, N]

    grid = (N // tm, N // tk)

    out = pl.pallas_call(
        _sage_out_kernel,
        grid=grid,
        in_specs=[
            pl.BlockSpec((tm, tk), lambda i, k: (i, k)),        # adjacency tile
            pl.BlockSpec((tk, nhid), lambda i, k: (k, 0)),      # H k-tile
            pl.BlockSpec((tm, nhid), lambda i, k: (i, 0)),      # relu(s) row tile
            pl.BlockSpec((nhid, c_pad), lambda i, k: (0, 0)),   # W_out root half (resident)
            pl.BlockSpec((nhid, c_pad), lambda i, k: (0, 0)),   # W_out agg half  (resident)
            pl.BlockSpec((1, c_pad), lambda i, k: (0, 0)),      # b_out
        ],
        out_specs=pl.BlockSpec((tm, c_pad), lambda i, k: (i, 0)),
        out_shape=jax.ShapeDtypeStruct((N, c_pad), f32),
        scratch_shapes=[pltpu.VMEM((tm, nhid), jnp.float32)],
        compiler_params=pltpu.CompilerParams(
            dimension_semantics=("parallel", "arbitrary")),
    )(adj_last, H_bf, S_bf, wS, wA, bout)

    return out[:, :num_classes]


# ---------------------------------------------------------------------------
# Pure-JAX reference (mirrors the original layer-by-layer forward with the
# same bf16-input / f32-accumulate MXU math as the kernel).
# ---------------------------------------------------------------------------
def _reference_forward(params, X, adjs, previous_indices):
    f32, bf16 = jnp.float32, jnp.bfloat16
    L = len(params["sage_w"])
    gate = jax.nn.sigmoid(params["fs_w"].astype(f32)).reshape(1, -1)
    Xg = X.astype(f32) * gate
    x = None
    for l in range(L):
        w = params["sage_w"][l].astype(f32)
        b = params["sage_b"][l].astype(f32)
        h = jnp.dot(Xg.astype(bf16), w.astype(bf16), preferred_element_type=f32) + b
        xs = jnp.take(Xg, previous_indices[l], axis=0)
        s = jnp.dot(xs.astype(bf16), w.astype(bf16), preferred_element_type=f32) + b
        a = jnp.dot(jnp.asarray(adjs)[l].astype(bf16), h.astype(bf16),
                    preferred_element_type=f32)
        x = jnp.maximum(jnp.concatenate([s, a], axis=1), 0.0)   # relu; dropout = id (eval)
    return (jnp.dot(x.astype(bf16), params["out_w"].astype(f32).astype(bf16),
                    preferred_element_type=f32)
            + params["out_b"].astype(f32))


def init_params(key, nfeat, nhid, num_classes, layers):
    ks = jax.random.split(key, 2 * (layers + 1) + 1)
    params = {"fs_w": jax.random.normal(ks[0], (nfeat,), jnp.float32) * 0.1}
    sage_w, sage_b = [], []
    for ell in range(layers):
        sage_w.append(jax.random.normal(ks[1 + 2 * ell], (nfeat, nhid), jnp.float32) * 0.1)
        sage_b.append(jax.random.normal(ks[2 + 2 * ell], (nhid,), jnp.float32) * 0.1)
    params["sage_w"] = sage_w
    params["sage_b"] = sage_b
    params["out_w"] = jax.random.normal(ks[-2], (2 * nhid, num_classes), jnp.float32) * 0.1
    params["out_b"] = jax.random.normal(ks[-1], (num_classes,), jnp.float32) * 0.1
    return params


if __name__ == "__main__":
    # Small deterministic configuration. nfeat == 2*nhid so the reference
    # forward's reuse of X_fs at every layer is shape-consistent for layers > 1.
    num_nodes = 512
    nhid = 128
    nfeat = 2 * nhid
    num_classes = 16
    layers = 2

    key = jax.random.PRNGKey(0)
    k_x, k_adj, k_perm, k_params = jax.random.split(key, 4)

    X = jax.random.normal(k_x, (num_nodes, nfeat), jnp.float32)

    # Dense, row-normalized nonnegative adjacency per layer (stand-in for the
    # torch.sparse_coo_tensor; spmm == dense matmul semantically).
    adj_raw = jax.random.uniform(k_adj, (layers, num_nodes, num_nodes), jnp.float32)
    adjs = adj_raw / jnp.sum(adj_raw, axis=-1, keepdims=True)

    # previous_indices: node IDs of the "root" nodes at each layer.
    previous_indices = jnp.stack(
        [jax.random.permutation(jax.random.fold_in(k_perm, ell), num_nodes)
         for ell in range(layers)]).astype(jnp.int32)

    params = init_params(k_params, nfeat, nhid, num_classes, layers)

    out = graphsage_second_forward(params, X, adjs, previous_indices)
    out = jax.block_until_ready(out)
    assert out.shape == (num_nodes, num_classes), out.shape
    assert bool(jnp.all(jnp.isfinite(out)))

    ref = _reference_forward(params, X, adjs, previous_indices)
    max_err = float(jnp.max(jnp.abs(out - ref)))
    assert bool(jnp.allclose(out, ref, rtol=1e-2, atol=2e-2)), max_err

    print("KERNEL_OK")
</pallas_src>

<mosaic_0001>
module attributes {stable_mosaic.version = 11 : i64} {
  func.func @_sage_out_kernel(%arg0: i32, %arg1: i32, %arg2: memref<256x256xbf16, #tpu.memory_space<vmem>>, %arg3: memref<256x128xbf16, #tpu.memory_space<vmem>>, %arg4: memref<256x128xbf16, #tpu.memory_space<vmem>>, %arg5: memref<128x128xbf16, #tpu.memory_space<vmem>>, %arg6: memref<128x128xbf16, #tpu.memory_space<vmem>>, %arg7: memref<1x128xf32, #tpu.memory_space<vmem>>, %arg8: memref<256x128xf32, #tpu.memory_space<vmem>>, %arg9: memref<256x128xf32, #tpu.memory_space<vmem>>) attributes {dimension_semantics = [#tpu.dimension_semantics<parallel>, #tpu.dimension_semantics<arbitrary>], iteration_bounds = array<i64: 2, 2>, scalar_prefetch = 0 : i64, scratch_operands = 1 : i64, tpu.core_type = #tpu.core_type<tc>, window_params = [{transform_indices = @transform_0, window_bounds = array<i64: 256, 256>}, {transform_indices = @transform_1, window_bounds = array<i64: 256, 128>}, {transform_indices = @transform_2, window_bounds = array<i64: 256, 128>}, {pipeline_mode = #tpu.pipeline_mode<synchronous>, transform_indices = @transform_3, window_bounds = array<i64: 128, 128>}, {pipeline_mode = #tpu.pipeline_mode<synchronous>, transform_indices = @transform_4, window_bounds = array<i64: 128, 128>}, {pipeline_mode = #tpu.pipeline_mode<synchronous>, transform_indices = @transform_5, window_bounds = array<i64: 1, 128>}, {transform_indices = @transform_6, window_bounds = array<i64: 256, 128>}]} {
    %c0_i32 = arith.constant 0 : i32
    %0 = arith.cmpi eq, %arg1, %c0_i32 : i32
    %1 = arith.extui %0 : i1 to i32
    %c0_i32_0 = arith.constant 0 : i32
    %2 = arith.cmpi ne, %1, %c0_i32_0 : i32
    scf.if %2 {
      %cst_9 = arith.constant 0.000000e+00 : f32
      %12 = vector.broadcast %cst_9 : f32 to vector<256x128xf32>
      %c0_10 = arith.constant 0 : index
      %c0_11 = arith.constant 0 : index
      %13 = vector.load %arg9[%c0_10, %c0_11] : memref<256x128xf32, #tpu.memory_space<vmem>>, vector<256x128xf32>
      tpu.vector_store %arg9[%c0_10, %c0_11], %12 {strides = array<i32>} : memref<256x128xf32, #tpu.memory_space<vmem>>, vector<256x128xf32>,
    } else {
    }
    %c0 = arith.constant 0 : index
    %c0_1 = arith.constant 0 : index
    %3 = vector.load %arg9[%c0, %c0_1] : memref<256x128xf32, #tpu.memory_space<vmem>>, vector<256x128xf32>
    %c0_2 = arith.constant 0 : index
    %c0_3 = arith.constant 0 : index
    %4 = vector.load %arg2[%c0_2, %c0_3] : memref<256x256xbf16, #tpu.memory_space<vmem>>, vector<256x256xbf16>
    %c0_4 = arith.constant 0 : index
    %c0_5 = arith.constant 0 : index
    %5 = vector.load %arg3[%c0_4, %c0_5] : memref<256x128xbf16, #tpu.memory_space<vmem>>, vector<256x128xbf16>
    %cst = arith.constant dense<0.000000e+00> : vector<256x128xf32>
    %6 = tpu.matmul %4, %5, %cst {dimension_numbers = #tpu.dot_dimension_numbers<[1], [0], [0], [1], [0, 0, 1, 1], [], []>} : vector<256x256xbf16>, vector<256x128xbf16>, vector<256x128xf32> -> vector<256x128xf32>
    %7 = arith.addf %3, %6 : vector<256x128xf32>
    %c0_6 = arith.constant 0 : index
    %c0_7 = arith.constant 0 : index
    %8 = vector.load %arg9[%c0_6, %c0_7] : memref<256x128xf32, #tpu.memory_space<vmem>>, vector<256x128xf32>
    tpu.vector_store %arg9[%c0_6, %c0_7], %7 {strides = array<i32>} : memref<256x128xf32, #tpu.memory_space<vmem>>, vector<256x128xf32>,
    %c1_i32 = arith.constant 1 : i32
    %9 = arith.cmpi eq, %arg1, %c1_i32 : i32
    %10 = arith.extui %9 : i1 to i32
    %c0_i32_8 = arith.constant 0 : i32
    %11 = arith.cmpi ne, %10, %c0_i32_8 : i32
    scf.if %11 {
      %c0_9 = arith.constant 0 : index
      %c0_10 = arith.constant 0 : index
      %12 = vector.load %arg9[%c0_9, %c0_10] : memref<256x128xf32, #tpu.memory_space<vmem>>, vector<256x128xf32>
      %cst_11 = arith.constant 0.000000e+00 : f32
      %13 = vector.broadcast %cst_11 : f32 to vector<256x128xf32>
      %14 = arith.maximumf %12, %13 : vector<256x128xf32>
      %15 = arith.truncf %14 : vector<256x128xf32> to vector<256x128xbf16>
      %c0_12 = arith.constant 0 : index
      %c0_13 = arith.constant 0 : index
      %16 = vector.load %arg4[%c0_12, %c0_13] : memref<256x128xbf16, #tpu.memory_space<vmem>>, vector<256x128xbf16>
      %c0_14 = arith.constant 0 : index
      %c0_15 = arith.constant 0 : index
      %17 = vector.load %arg5[%c0_14, %c0_15] : memref<128x128xbf16, #tpu.memory_space<vmem>>, vector<128x128xbf16>
      %cst_16 = arith.constant dense<0.000000e+00> : vector<256x128xf32>
      %18 = tpu.matmul %16, %17, %cst_16 {dimension_numbers = #tpu.dot_dimension_numbers<[1], [0], [0], [1], [0, 0, 1, 1], [], []>} : vector<256x128xbf16>, vector<128x128xbf16>, vector<256x128xf32> -> vector<256x128xf32>
      %c0_17 = arith.constant 0 : index
      %c0_18 = arith.constant 0 : index
      %19 = vector.load %arg6[%c0_17, %c0_18] : memref<128x128xbf16, #tpu.memory_space<vmem>>, vector<128x128xbf16>
      %cst_19 = arith.constant dense<0.000000e+00> : vector<256x128xf32>
      %20 = tpu.matmul %15, %19, %cst_19 {dimension_numbers = #tpu.dot_dimension_numbers<[1], [0], [0], [1], [0, 0, 1, 1], [], []>} : vector<256x128xbf16>, vector<128x128xbf16>, vector<256x128xf32> -> vector<256x128xf32>
      %21 = arith.addf %18, %20 : vector<256x128xf32>
      %c0_20 = arith.constant 0 : index
      %c0_21 = arith.constant 0 : index
      %22 = vector.load %arg7[%c0_20, %c0_21] : memref<1x128xf32, #tpu.memory_space<vmem>>, vector<1x128xf32>
      %23 = vector.broadcast %22 : vector<1x128xf32> to vector<256x128xf32>
      %24 = arith.addf %21, %23 : vector<256x128xf32>
      %c0_22 = arith.constant 0 : index
      %c0_23 = arith.constant 0 : index
      %25 = vector.load %arg8[%c0_22, %c0_23] : memref<256x128xf32, #tpu.memory_space<vmem>>, vector<256x128xf32>
      tpu.vector_store %arg8[%c0_22, %c0_23], %24 {strides = array<i32>} : memref<256x128xf32, #tpu.memory_space<vmem>>, vector<256x128xf32>,
    } else {
    }
    return
  }
  func.func @transform_0(%arg0: i32, %arg1: i32) -> (i32, i32) {
    %c0_i32 = arith.constant 0 : i32
    return %arg0, %arg1 : i32, i32
  }
  func.func @transform_1(%arg0: i32, %arg1: i32) -> (i32, i32) {
    %c0_i32 = arith.constant 0 : i32
    %c0_i32_0 = arith.constant 0 : i32
    return %arg1, %c0_i32 : i32, i32
  }
  func.func @transform_2(%arg0: i32, %arg1: i32) -> (i32, i32) {
    %c0_i32 = arith.constant 0 : i32
    %c0_i32_0 = arith.constant 0 : i32
    return %arg0, %c0_i32 : i32, i32
  }
  func.func @transform_3(%arg0: i32, %arg1: i32) -> (i32, i32) {
    %c0_i32 = arith.constant 0 : i32
    %c0_i32_0 = arith.constant 0 : i32
    %c0_i32_1 = arith.constant 0 : i32
    return %c0_i32, %c0_i32_0 : i32, i32
  }
  func.func @transform_4(%arg0: i32, %arg1: i32) -> (i32, i32) {
    %c0_i32 = arith.constant 0 : i32
    %c0_i32_0 = arith.constant 0 : i32
    %c0_i32_1 = arith.constant 0 : i32
    return %c0_i32, %c0_i32_0 : i32, i32
  }
  func.func @transform_5(%arg0: i32, %arg1: i32) -> (i32, i32) {
    %c0_i32 = arith.constant 0 : i32
    %c0_i32_0 = arith.constant 0 : i32
    %c0_i32_1 = arith.constant 0 : i32
    return %c0_i32, %c0_i32_0 : i32, i32
  }
  func.func @transform_6(%arg0: i32, %arg1: i32) -> (i32, i32) {
    %c0_i32 = arith.constant 0 : i32
    %c0_i32_0 = arith.constant 0 : i32
    return %arg0, %c0_i32 : i32, i32
  }
}

</mosaic_0001>

<llo_original>
// kernel: graphsage_second_forward.1
$region0: #{graphsage_second_forward.1}
  #allocation0 [shape = 'u32[]', space=smem, size = 0x4, offset = 0x4, fixed_abs, tag = 'smem constant byte address 0x4 - core index']
  #allocation1 [shape = 'u32[144,128]{1,0:T(1,128)}', space=vmem, size = 0x12000, scoped, tag = 'internal scratch']
  #allocation2 [shape = 'f32[256,128]{1,0:T(8,128)}', space=vmem, size = 0x20000, scoped, tag = 'scratch operand']
  %s0 = inlined_call_operand.vmem [shape: bf16[512,512], index: 0, kind: input, shape index: {}]
  %s1 = inlined_call_operand.vmem [shape: bf16[512,128], index: 1, kind: input, shape index: {}]
  %s2 = inlined_call_operand.vmem [shape: bf16[512,128], index: 2, kind: input, shape index: {}]
  %s3 = inlined_call_operand.vmem [shape: bf16[128,128], index: 3, kind: input, shape index: {}]
  %s4 = inlined_call_operand.vmem [shape: bf16[128,128], index: 4, kind: input, shape index: {}]
  %s5 = inlined_call_operand.vmem [shape: f32[1,128], index: 5, kind: input, shape index: {}]
  %s6 = inlined_call_operand.vmem [shape: f32[512,128], index: 6, kind: output, shape index: {}]
  %s7 = sld [smem:[#allocation0]]
  $region103: #{graphsage_second_forward.1} parent=0
    _
  %s9 = ssub.s32 1, %s7
  %s10 = scalar_select 0, %s9, %s7
  $region1: #{graphsage_second_forward.1} parent=0
    #allocation3 [shape = 'u8[262144]{0}', space=vmem, size = 0x40000, scoped, tag = 'input window, operand 0']
    loop: start=0, step=1, limit=6
    $region2: #{graphsage_second_forward.1} parent=1 // loop_pre_header
      _
    $region3: #{graphsage_second_forward.1} parent=1 // loop_header
      %s12 = sphi 0, %s16
      %p13 = scmp.ge.s32.totalorder %s12, 6
      %s19 = sphi 0, %s31
      %s20 = sphi 0, %s27
      %s21 = sphi 0, %s19
      %s22 = sphi 0, %s20
      %s23 = sphi 0, %s21
      %s24 = sphi 0, %s22
      %s36 = sphi 0, %s38
      %s39 = sphi 0, %s36
      %s40 = sphi 0, %s39
      %s56 = sphi 0, %s40
      %s62 = sphi 0, %s64
      %s65 = sphi 0, %s62
      %s66 = sphi 0, %s65
      %s82 = sphi 0, %s66
      %s88 = sphi 0, %s90
      %s91 = sphi 0, %s88
      %s92 = sphi 0, %s91
      %s108 = sphi 0, %s92
      %s112 = sphi 0, %s112
      %s114 = sphi 0, %s112
      %s115 = sphi 0, %s114
      %s129 = sphi 0, %s115
      %s133 = sphi 0, %s133
      %s135 = sphi 0, %s133
      %s136 = sphi 0, %s135
      %s150 = sphi 0, %s136
      %s154 = sphi 0, %s154
      %s156 = sphi 0, %s154
      %s157 = sphi 0, %s156
      %s171 = sphi 0, %s157
      %s177 = sphi 0, %s179
      %s180 = sphi 0, %s177
      %s181 = sphi 0, %s180
      %s197 = sphi 0, %s181
    $region4: #{graphsage_second_forward.1} parent=1 // loop_header_branch
      %15 = sbr.rel (%p13) target = $region8
    $region5: #{graphsage_second_forward.1} parent=1 // loop_body
      %s17 = ssub.s32 %s12, 1
      %s18 = ssub.s32 %s12, 2
      %s25 = sadd.s32 1, %s20
      %p26 = scmp.ge.s32.totalorder %s25, 2
      %s27 = scalar_select %p26, 0, %s25
      %s28 = sadd.s32 1, %s19
      %s29 = scalar_select %p26, %s28, %s19
      %p30 = scmp.ge.s32.totalorder %s29, 2
      %s31 = scalar_select %p30, 0, %s29
      %s32 = ssub.s32 %s19, %s31
      %s33 = ssub.s32 %s20, %s27
      %s34 = sor.u32 %s32, %s33
      %p35 = scmp.eq.s32.totalorder %s34, 0
      %s37 = sadd.s32 %s36, 1
      %s38 = scalar_select %p35, %s36, %s37
      %p41 = pneg %p35
      %p42 = scmp.eq.s32.totalorder %s12, 3
      %p43 = por %p41, %p42
      %p44 = scmp.ne.s32.totalorder %s36, %s39
      %p45 = scmp.eq.s32.totalorder %s12, 0
      %p46 = por %p44, %p45
      %p47 = scmp.ne.s32.totalorder %s36, %s39
      %p48 = scmp.eq.s32.totalorder %s17, 3
      %p49 = por %p47, %p48
      %p50 = scmp.ne.s32.totalorder %s39, %s40
      %p51 = scmp.eq.s32.totalorder %s17, 0
      %p52 = por %p50, %p51
      %p53 = scmp.ne.s32.totalorder %s39, %s40
      %p54 = scmp.eq.s32.totalorder %s18, 3
      %p55 = por %p53, %p54
      %p57 = scmp.ne.s32.totalorder %s40, %s56
      %p58 = scmp.eq.s32.totalorder %s18, 0
      %p59 = por %p57, %p58
      %s60 = ssub.s32 %s20, %s27
      %p61 = scmp.eq.s32.totalorder %s60, 0
      %s63 = sadd.s32 %s62, 1
      %s64 = scalar_select %p61, %s62, %s63
      %p67 = pneg %p61
      %p68 = scmp.eq.s32.totalorder %s12, 3
      %p69 = por %p67, %p68
      %p70 = scmp.ne.s32.totalorder %s62, %s65
      %p71 = scmp.eq.s32.totalorder %s12, 0
      %p72 = por %p70, %p71
      %p73 = scmp.ne.s32.totalorder %s62, %s65
      %p74 = scmp.eq.s32.totalorder %s17, 3
      %p75 = por %p73, %p74
      %p76 = scmp.ne.s32.totalorder %s65, %s66
      %p77 = scmp.eq.s32.totalorder %s17, 0
      %p78 = por %p76, %p77
      %p79 = scmp.ne.s32.totalorder %s65, %s66
      %p80 = scmp.eq.s32.totalorder %s18, 3
      %p81 = por %p79, %p80
      %p83 = scmp.ne.s32.totalorder %s66, %s82
      %p84 = scmp.eq.s32.totalorder %s18, 0
      %p85 = por %p83, %p84
      %s86 = ssub.s32 %s19, %s31
      %p87 = scmp.eq.s32.totalorder %s86, 0
      %s89 = sadd.s32 %s88, 1
      %s90 = scalar_select %p87, %s88, %s89
      %p93 = pneg %p87
      %p94 = scmp.eq.s32.totalorder %s12, 3
      %p95 = por %p93, %p94
      %p96 = scmp.ne.s32.totalorder %s88, %s91
      %p97 = scmp.eq.s32.totalorder %s12, 0
      %p98 = por %p96, %p97
      %p99 = scmp.ne.s32.totalorder %s88, %s91
      %p100 = scmp.eq.s32.totalorder %s17, 3
      %p101 = por %p99, %p100
      %p102 = scmp.ne.s32.totalorder %s91, %s92
      %p103 = scmp.eq.s32.totalorder %s17, 0
      %p104 = por %p102, %p103
      %p105 = scmp.ne.s32.totalorder %s91, %s92
      %p106 = scmp.eq.s32.totalorder %s18, 3
      %p107 = por %p105, %p106
      %p109 = scmp.ne.s32.totalorder %s92, %s108
      %p110 = scmp.eq.s32.totalorder %s18, 0
      %p111 = por %p109, %p110
      %s113 = sadd.s32 %s112, 1
      %p116 = scmp.eq.s32.totalorder %s12, 3
      %p117 = scmp.ne.s32.totalorder %s112, %s114
      %p118 = scmp.eq.s32.totalorder %s12, 0
      %p119 = por %p117, %p118
      %p120 = scmp.ne.s32.totalorder %s112, %s114
      %p121 = scmp.eq.s32.totalorder %s17, 3
      %p122 = por %p120, %p121
      %p123 = scmp.ne.s32.totalorder %s114, %s115
      %p124 = scmp.eq.s32.totalorder %s17, 0
      %p125 = por %p123, %p124
      %p126 = scmp.ne.s32.totalorder %s114, %s115
      %p127 = scmp.eq.s32.totalorder %s18, 3
      %p128 = por %p126, %p127
      %p130 = scmp.ne.s32.totalorder %s115, %s129
      %p131 = scmp.eq.s32.totalorder %s18, 0
      %p132 = por %p130, %p131
      %s134 = sadd.s32 %s133, 1
      %p137 = scmp.eq.s32.totalorder %s12, 3
      %p138 = scmp.ne.s32.totalorder %s133, %s135
      %p139 = scmp.eq.s32.totalorder %s12, 0
      %p140 = por %p138, %p139
      %p141 = scmp.ne.s32.totalorder %s133, %s135
      %p142 = scmp.eq.s32.totalorder %s17, 3
      %p143 = por %p141, %p142
      %p144 = scmp.ne.s32.totalorder %s135, %s136
      %p145 = scmp.eq.s32.totalorder %s17, 0
      %p146 = por %p144, %p145
      %p147 = scmp.ne.s32.totalorder %s135, %s136
      %p148 = scmp.eq.s32.totalorder %s18, 3
      %p149 = por %p147, %p148
      %p151 = scmp.ne.s32.totalorder %s136, %s150
      %p152 = scmp.eq.s32.totalorder %s18, 0
      %p153 = por %p151, %p152
      %s155 = sadd.s32 %s154, 1
      %p158 = scmp.eq.s32.totalorder %s12, 3
      %p159 = scmp.ne.s32.totalorder %s154, %s156
      %p160 = scmp.eq.s32.totalorder %s12, 0
      %p161 = por %p159, %p160
      %p162 = scmp.ne.s32.totalorder %s154, %s156
      %p163 = scmp.eq.s32.totalorder %s17, 3
      %p164 = por %p162, %p163
      %p165 = scmp.ne.s32.totalorder %s156, %s157
      %p166 = scmp.eq.s32.totalorder %s17, 0
      %p167 = por %p165, %p166
      %p168 = scmp.ne.s32.totalorder %s156, %s157
      %p169 = scmp.eq.s32.totalorder %s18, 3
      %p170 = por %p168, %p169
      %p172 = scmp.ne.s32.totalorder %s157, %s171
      %p173 = scmp.eq.s32.totalorder %s18, 0
      %p174 = por %p172, %p173
      %s175 = ssub.s32 %s19, %s31
      %p176 = scmp.eq.s32.totalorder %s175, 0
      %s178 = sadd.s32 %s177, 1
      %s179 = scalar_select %p176, %s177, %s178
      %p182 = pneg %p176
      %p183 = scmp.eq.s32.totalorder %s12, 3
      %p184 = por %p182, %p183
      %p185 = scmp.ne.s32.totalorder %s177, %s180
      %p186 = scmp.eq.s32.totalorder %s12, 0
      %p187 = por %p185, %p186
      %p188 = scmp.ne.s32.totalorder %s177, %s180
      %p189 = scmp.eq.s32.totalorder %s17, 3
      %p190 = por %p188, %p189
      %p191 = scmp.ne.s32.totalorder %s180, %s181
      %p192 = scmp.eq.s32.totalorder %s17, 0
      %p193 = por %p191, %p192
      %p194 = scmp.ne.s32.totalorder %s180, %s181
      %p195 = scmp.eq.s32.totalorder %s18, 3
      %p196 = por %p194, %p195
      %p198 = scmp.ne.s32.totalorder %s181, %s197
      %p199 = scmp.eq.s32.totalorder %s18, 0
      %p200 = por %p198, %p199
      %p201 = scmp.le.s32.totalorder 1, %s12
      %p202 = scmp.lt.s32.totalorder %s12, 5
      %p203 = pnand %p201, %p202
      %p204 = pneg %p203
      // Predicated region
      $region9: #{graphsage_second_forward.1} parent=5 // pred_check
        _
      $region10: #{graphsage_second_forward.1} parent=5 // pred_check_branch
        %206 = sbr.rel (%p203) target = $region12
      $region11: #{graphsage_second_forward.1} parent=5 // pred_region
        %s207 = ssub.s32 %s12, 1
        // Predicated region
        $region13: #{graphsage_second_forward.1} parent=11 // pred_check
          %p208 = pneg %p125
        $region14: #{graphsage_second_forward.1} parent=11 // pred_check_branch
          %210 = sbr.rel (%p208) target = $region16
        $region15: #{graphsage_second_forward.1} parent=11 // pred_region
          _
        $region16: #{graphsage_second_forward.1} parent=11 // pred_fallthru
          _
        // Predicated region
        $region17: #{graphsage_second_forward.1} parent=11 // pred_check
          %p211 = pneg %p146
        $region18: #{graphsage_second_forward.1} parent=11 // pred_check_branch
          %213 = sbr.rel (%p211) target = $region20
        $region19: #{graphsage_second_forward.1} parent=11 // pred_region
          _
        $region20: #{graphsage_second_forward.1} parent=11 // pred_fallthru
          _
        // Predicated region
        $region21: #{graphsage_second_forward.1} parent=11 // pred_check
          %p214 = pneg %p167
        $region22: #{graphsage_second_forward.1} parent=11 // pred_check_branch
          %216 = sbr.rel (%p214) target = $region24
        $region23: #{graphsage_second_forward.1} parent=11 // pred_region
          _
        $region24: #{graphsage_second_forward.1} parent=11 // pred_fallthru
          _
      $region12: #{graphsage_second_forward.1} parent=5 // pred_fallthru
        _
      %p217 = scmp.lt.s32.totalorder %s12, 4
      // Predicated region
      $region25: #{graphsage_second_forward.1} parent=5 // pred_check
        %p218 = pneg %p217
      $region26: #{graphsage_second_forward.1} parent=5 // pred_check_branch
        %220 = sbr.rel (%p218) target = $region28
      $region27: #{graphsage_second_forward.1} parent=5 // pred_region
        // Predicated region
        $region29: #{graphsage_second_forward.1} parent=27 // pred_check
          %p221 = pneg %p46
        $region30: #{graphsage_second_forward.1} parent=27 // pred_check_branch
          %223 = sbr.rel (%p221) target = $region32
        $region31: #{graphsage_second_forward.1} parent=27 // pred_region
          %s224 = sand.u32 %s36, 1
          %s225 = sand.u32 %s36, 1
          %s226 = smul.addr %s225, 256
          %s227 = scalar_lea.vmem [#allocation3], %s226
          %s228 = smul.u32 32, %s19
          %s229 = smul.u32 2, %s20
          %s230 = smul.addr %s228, 4
          %s231 = sadd.s32 %s229, %s230
          %s232 = smul.addr %s231, 4
          %s233 = scalar_lea.vmem %s0, %s232
          // Predicated region
          $region33: #{graphsage_second_forward.1} parent=31 // pred_check
            _
          $region34: #{graphsage_second_forward.1} parent=31 // pred_check_branch
            %235 = sbr.rel (0) target = $region36
          $region35: #{graphsage_second_forward.1} parent=31 // pred_region
            // Predicated region
            $region37: #{graphsage_second_forward.1} parent=35 // pred_check
              _
            $region38: #{graphsage_second_forward.1} parent=35 // pred_check_branch
              %237 = sbr.rel (0) target = $region40
            $region39: #{graphsage_second_forward.1} parent=35 // pred_region
              // Predicated region
              $region52: #{graphsage_second_forward.1} parent=39 // pred_check
                _
              $region53: #{graphsage_second_forward.1} parent=39 // pred_check_branch
                %314 = sbr.rel (0) target = $region55
              $region54: #{graphsage_second_forward.1} parent=39 // pred_region
                loop: start=0, step=1, limit=1
                $region56: #{graphsage_second_forward.1} parent=54 // loop_pre_header
                  _
                $region57: #{graphsage_second_forward.1} parent=54 // loop_header
                  %s316 = sphi 0, %s320
                  %p317 = scmp.ge.s32.totalorder %s316, 1
                  %s321 = sphi %s233, %s233
                  %s322 = sphi %s227, %s227
                $region58: #{graphsage_second_forward.1} parent=54 // loop_header_branch
                  %319 = sbr.rel (%p317) target = $region62
                $region59: #{graphsage_second_forward.1} parent=54 // loop_body
                  %v323 = vld [vmem:[%s321] sm:$0xff]
                  %324 = vst [vmem:[%s322] sm:$0xff] %v323
                  %v325 = vld [vmem:[%s321 + $0x10] sm:$0xff]
                  %326 = vst [vmem:[%s322 + $0x8] sm:$0xff] %v325
                  %v327 = vld [vmem:[%s321 + $0x20] sm:$0xff]
                  %328 = vst [vmem:[%s322 + $0x10] sm:$0xff] %v327
                  %v329 = vld [vmem:[%s321 + $0x30] sm:$0xff]
                  %330 = vst [vmem:[%s322 + $0x18] sm:$0xff] %v329
                  %v331 = vld [vmem:[%s321 + $0x40] sm:$0xff]
                  %332 = vst [vmem:[%s322 + $0x20] sm:$0xff] %v331
                  %v333 = vld [vmem:[%s321 + $0x50] sm:$0xff]
                  %334 = vst [vmem:[%s322 + $0x28] sm:$0xff] %v333
                  %v335 = vld [vmem:[%s321 + $0x60] sm:$0xff]
                  %336 = vst [vmem:[%s322 + $0x30] sm:$0xff] %v335
                  %v337 = vld [vmem:[%s321 + $0x70] sm:$0xff]
                  %338 = vst [vmem:[%s322 + $0x38] sm:$0xff] %v337
                  %v339 = vld [vmem:[%s321 + $0x80] sm:$0xff]
                  %340 = vst [vmem:[%s322 + $0x40] sm:$0xff] %v339
                  %v341 = vld [vmem:[%s321 + $0x90] sm:$0xff]
                  %342 = vst [vmem:[%s322 + $0x48] sm:$0xff] %v341
                  %v343 = vld [vmem:[%s321 + $0xa0] sm:$0xff]
                  %344 = vst [vmem:[%s322 + $0x50] sm:$0xff] %v343
                  %v345 = vld [vmem:[%s321 + $0xb0] sm:$0xff]
                  %346 = vst [vmem:[%s322 + $0x58] sm:$0xff] %v345
                  %v347 = vld [vmem:[%s321 + $0xc0] sm:$0xff]
                  %348 = vst [vmem:[%s322 + $0x60] sm:$0xff] %v347
                  %v349 = vld [vmem:[%s321 + $0xd0] sm:$0xff]
                  %350 = vst [vmem:[%s322 + $0x68] sm:$0xff] %v349
                  %v351 = vld [vmem:[%s321 + $0xe0] sm:$0xff]
                  %352 = vst [vmem:[%s322 + $0x70] sm:$0xff] %v351
                  %v353 = vld [vmem:[%s321 + $0xf0] sm:$0xff]
                  %354 = vst [vmem:[%s322 + $0x78] sm:$0xff] %v353
                  %v355 = vld [vmem:[%s321 + $0x100] sm:$0xff]
                  %356 = vst [vmem:[%s322 + $0x80] sm:$0xff] %v355
                  %v357 = vld [vmem:[%s321 + $0x110] sm:$0xff]
                  %358 = vst [vmem:[%s322 + $0x88] sm:$0xff] %v357
                  %v359 = vld [vmem:[%s321 + $0x120] sm:$0xff]
                  %360 = vst [vmem:[%s322 + $0x90] sm:$0xff] %v359
                  %v361 = vld [vmem:[%s321 + $0x130] sm:$0xff]
                  %362 = vst [vmem:[%s322 + $0x98] sm:$0xff] %v361
                  %v363 = vld [vmem:[%s321 + $0x140] sm:$0xff]
                  %364 = vst [vmem:[%s322 + $0xa0] sm:$0xff] %v363
                  %v365 = vld [vmem:[%s321 + $0x150] sm:$0xff]
                  %366 = vst [vmem:[%s322 + $0xa8] sm:$0xff] %v365
                  %v367 = vld [vmem:[%s321 + $0x160] sm:$0xff]
                  %368 = vst [vmem:[%s322 + $0xb0] sm:$0xff] %v367
                  %v369 = vld [vmem:[%s321 + $0x170] sm:$0xff]
                  %370 = vst [vmem:[%s322 + $0xb8] sm:$0xff] %v369
                  %v371 = vld [vmem:[%s321 + $0x180] sm:$0xff]
                  %372 = vst [vmem:[%s322 + $0xc0] sm:$0xff] %v371
                  %v373 = vld [vmem:[%s321 + $0x190] sm:$0xff]
                  %374 = vst [vmem:[%s322 + $0xc8] sm:$0xff] %v373
                  %v375 = vld [vmem:[%s321 + $0x1a0] sm:$0xff]
                  %376 = vst [vmem:[%s322 + $0xd0] sm:$0xff] %v375
                  %v377 = vld [vmem:[%s321 + $0x1b0] sm:$0xff]
                  %378 = vst [vmem:[%s322 + $0xd8] sm:$0xff] %v377
                  %v379 = vld [vmem:[%s321 + $0x1c0] sm:$0xff]
                  %380 = vst [vmem:[%s322 + $0xe0] sm:$0xff] %v379
                  %v381 = vld [vmem:[%s321 + $0x1d0] sm:$0xff]
                  %382 = vst [vmem:[%s322 + $0xe8] sm:$0xff] %v381
                  %v383 = vld [vmem:[%s321 + $0x1e0] sm:$0xff]
                  %384 = vst [vmem:[%s322 + $0xf0] sm:$0xff] %v383
                  %v385 = vld [vmem:[%s321 + $0x1f0] sm:$0xff]
                  %386 = vst [vmem:[%s322 + $0xf8] sm:$0xff] %v385
                $region60: #{graphsage_second_forward.1} parent=54 // loop_footer
                  %s320 = sadd.s32 1, %s316
                $region61: #{graphsage_second_forward.1} parent=54 // loop_footer_branch
                  %315 = sbr.rel target = $region57
                $region62: #{graphsage_second_forward.1} parent=54 // loop_exit
                  _
              $region55: #{graphsage_second_forward.1} parent=39 // pred_fallthru
                _
              // Predicated region
              $region63: #{graphsage_second_forward.1} parent=39 // pred_check
                _
              $region64: #{graphsage_second_forward.1} parent=39 // pred_check_branch
                %388 = sbr.rel target = $region66
              $region65: #{graphsage_second_forward.1} parent=39 // pred_region
                _
              $region66: #{graphsage_second_forward.1} parent=39 // pred_fallthru
                _
            $region40: #{graphsage_second_forward.1} parent=35 // pred_fallthru
              _
            // Predicated region
            $region41: #{graphsage_second_forward.1} parent=35 // pred_check
              _
            $region42: #{graphsage_second_forward.1} parent=35 // pred_check_branch
              %239 = sbr.rel target = $region44
            $region43: #{graphsage_second_forward.1} parent=35 // pred_region
              loop: start=0, step=1, limit=1
              $region45: #{graphsage_second_forward.1} parent=43 // loop_pre_header
                _
              $region46: #{graphsage_second_forward.1} parent=43 // loop_header
                %s242 = sphi 0, %s246
                %p243 = scmp.ge.s32.totalorder %s242, 1
                %s247 = sphi %s233, %s233
                %s248 = sphi %s227, %s227
              $region47: #{graphsage_second_forward.1} parent=43 // loop_header_branch
                %245 = sbr.rel (%p243) target = $region51
              $region48: #{graphsage_second_forward.1} parent=43 // loop_body
                %v249 = vld [vmem:[%s247] sm:$0xff]
                %250 = vst [vmem:[%s248] sm:$0xff] %v249
                %v251 = vld [vmem:[%s247 + $0x10] sm:$0xff]
                %252 = vst [vmem:[%s248 + $0x8] sm:$0xff] %v251
                %v253 = vld [vmem:[%s247 + $0x20] sm:$0xff]
                %254 = vst [vmem:[%s248 + $0x10] sm:$0xff] %v253
                %v255 = vld [vmem:[%s247 + $0x30] sm:$0xff]
                %256 = vst [vmem:[%s248 + $0x18] sm:$0xff] %v255
                %v257 = vld [vmem:[%s247 + $0x40] sm:$0xff]
                %258 = vst [vmem:[%s248 + $0x20] sm:$0xff] %v257
                %v259 = vld [vmem:[%s247 + $0x50] sm:$0xff]
                %260 = vst [vmem:[%s248 + $0x28] sm:$0xff] %v259
                %v261 = vld [vmem:[%s247 + $0x60] sm:$0xff]
                %262 = vst [vmem:[%s248 + $0x30] sm:$0xff] %v261
                %v263 = vld [vmem:[%s247 + $0x70] sm:$0xff]
                %264 = vst [vmem:[%s248 + $0x38] sm:$0xff] %v263
                %v265 = vld [vmem:[%s247 + $0x80] sm:$0xff]
                %266 = vst [vmem:[%s248 + $0x40] sm:$0xff] %v265
                %v267 = vld [vmem:[%s247 + $0x90] sm:$0xff]
                %268 = vst [vmem:[%s248 + $0x48] sm:$0xff] %v267
                %v269 = vld [vmem:[%s247 + $0xa0] sm:$0xff]
                %270 = vst [vmem:[%s248 + $0x50] sm:$0xff] %v269
                %v271 = vld [vmem:[%s247 + $0xb0] sm:$0xff]
                %272 = vst [vmem:[%s248 + $0x58] sm:$0xff] %v271
                %v273 = vld [vmem:[%s247 + $0xc0] sm:$0xff]
                %274 = vst [vmem:[%s248 + $0x60] sm:$0xff] %v273
                %v275 = vld [vmem:[%s247 + $0xd0] sm:$0xff]
                %276 = vst [vmem:[%s248 + $0x68] sm:$0xff] %v275
                %v277 = vld [vmem:[%s247 + $0xe0] sm:$0xff]
                %278 = vst [vmem:[%s248 + $0x70] sm:$0xff] %v277
                %v279 = vld [vmem:[%s247 + $0xf0] sm:$0xff]
                %280 = vst [vmem:[%s248 + $0x78] sm:$0xff] %v279
                %v281 = vld [vmem:[%s247 + $0x100] sm:$0xff]
                %282 = vst [vmem:[%s248 + $0x80] sm:$0xff] %v281
                %v283 = vld [vmem:[%s247 + $0x110] sm:$0xff]
                %284 = vst [vmem:[%s248 + $0x88] sm:$0xff] %v283
                %v285 = vld [vmem:[%s247 + $0x120] sm:$0xff]
                %286 = vst [vmem:[%s248 + $0x90] sm:$0xff] %v285
                %v287 = vld [vmem:[%s247 + $0x130] sm:$0xff]
                %288 = vst [vmem:[%s248 + $0x98] sm:$0xff] %v287
                %v289 = vld [vmem:[%s247 + $0x140] sm:$0xff]
                %290 = vst [vmem:[%s248 + $0xa0] sm:$0xff] %v289
                %v291 = vld [vmem:[%s247 + $0x150] sm:$0xff]
                %292 = vst [vmem:[%s248 + $0xa8] sm:$0xff] %v291
                %v293 = vld [vmem:[%s247 + $0x160] sm:$0xff]
                %294 = vst [vmem:[%s248 + $0xb0] sm:$0xff] %v293
                %v295 = vld [vmem:[%s247 + $0x170] sm:$0xff]
                %296 = vst [vmem:[%s248 + $0xb8] sm:$0xff] %v295
                %v297 = vld [vmem:[%s247 + $0x180] sm:$0xff]
                %298 = vst [vmem:[%s248 + $0xc0] sm:$0xff] %v297
                %v299 = vld [vmem:[%s247 + $0x190] sm:$0xff]
                %300 = vst [vmem:[%s248 + $0xc8] sm:$0xff] %v299
                %v301 = vld [vmem:[%s247 + $0x1a0] sm:$0xff]
                %302 = vst [vmem:[%s248 + $0xd0] sm:$0xff] %v301
                %v303 = vld [vmem:[%s247 + $0x1b0] sm:$0xff]
                %304 = vst [vmem:[%s248 + $0xd8] sm:$0xff] %v303
                %v305 = vld [vmem:[%s247 + $0x1c0] sm:$0xff]
                %306 = vst [vmem:[%s248 + $0xe0] sm:$0xff] %v305
                %v307 = vld [vmem:[%s247 + $0x1d0] sm:$0xff]
                %308 = vst [vmem:[%s248 + $0xe8] sm:$0xff] %v307
                %v309 = vld [vmem:[%s247 + $0x1e0] sm:$0xff]
                %310 = vst [vmem:[%s248 + $0xf0] sm:$0xff] %v309
                %v311 = vld [vmem:[%s247 + $0x1f0] sm:$0xff]
                %312 = vst [vmem:[%s248 + $0xf8] sm:$0xff] %v311
              $region49: #{graphsage_second_forward.1} parent=43 // loop_footer
                %s246 = sadd.s32 1, %s242
              $region50: #{graphsage_second_forward.1} parent=43 // loop_footer_branch
                %241 = sbr.rel target = $region46
              $region51: #{graphsage_second_forward.1} parent=43 // loop_exit
                _
            $region44: #{graphsage_second_forward.1} parent=35 // pred_fallthru
              _
          $region36: #{graphsage_second_forward.1} parent=31 // pred_fallthru
            _
          %389 = vnop
        $region32: #{graphsage_second_forward.1} parent=27 // pred_fallthru
          _
        // Predicated region
        $region67: #{graphsage_second_forward.1} parent=27 // pred_check
          %p390 = pneg %p72
        $region68: #{graphsage_second_forward.1} parent=27 // pred_check_branch
          %392 = sbr.rel (%p390) target = $region70
        $region69: #{graphsage_second_forward.1} parent=27 // pred_region
          %s393 = smul.u32 32, %s20
          %p394 = scmp.lt.s32.totalorder %s393, 63
          %s395 = scalar_select %p394, %s393, 63
          %s396 = smul.addr %s395, 4
          %s397 = scalar_lea.vmem %s1, %s396
          %s398 = smul.u32 32, %s20
        $region70: #{graphsage_second_forward.1} parent=27 // pred_fallthru
          _
        // Predicated region
        $region71: #{graphsage_second_forward.1} parent=27 // pred_check
          %p399 = pneg %p98
        $region72: #{graphsage_second_forward.1} parent=27 // pred_check_branch
          %401 = sbr.rel (%p399) target = $region74
        $region73: #{graphsage_second_forward.1} parent=27 // pred_region
          %s402 = smul.u32 32, %s19
          %p403 = scmp.lt.s32.totalorder %s402, 63
          %s404 = scalar_select %p403, %s402, 63
          %s405 = smul.addr %s404, 4
          %s406 = scalar_lea.vmem %s2, %s405
          %s407 = smul.u32 32, %s19
        $region74: #{graphsage_second_forward.1} parent=27 // pred_fallthru
          _
      $region28: #{graphsage_second_forward.1} parent=5 // pred_fallthru
        _
      %p408 = scmp.le.s32.totalorder 1, %s12
      %p409 = scmp.lt.s32.totalorder %s12, 5
      %p410 = pnand %p408, %p409
      %p411 = pneg %p410
      // Predicated region
      $region75: #{graphsage_second_forward.1} parent=5 // pred_check
        _
      $region76: #{graphsage_second_forward.1} parent=5 // pred_check_branch
        %413 = sbr.rel (%p410) target = $region78
      $region77: #{graphsage_second_forward.1} parent=5 // pred_region
        %s414 = ssub.s32 %s12, 1
        %s415 = sand.u32 %s39, 1
        %s416 = sand.u32 %s39, 1
        %s417 = smul.addr %s416, 256
        %s418 = scalar_lea.vmem [#allocation3], %s417
        // Predicated region
        $region79: #{graphsage_second_forward.1} parent=77 // pred_check
          %p419 = pneg %p52
        $region80: #{graphsage_second_forward.1} parent=77 // pred_check_branch
          %421 = sbr.rel (%p419) target = $region82
        $region81: #{graphsage_second_forward.1} parent=77 // pred_region
          _
        $region82: #{graphsage_second_forward.1} parent=77 // pred_fallthru
          _
        %s422 = sand.u32 %s39, 1
        %s423 = sand.u32 %s39, 1
        %s424 = smul.addr %s423, 256
        %s425 = scalar_lea.vmem [#allocation3], %s424
        %p426 = pneg %p52
        %p427 = pneg %p49
        %s428 = smul.u32 32, %s22
        %p429 = scmp.lt.s32.totalorder %s428, 63
        %s430 = scalar_select %p429, %s428, 63
        %s431 = smul.addr %s430, 4
        %s432 = scalar_lea.vmem %s1, %s431
        %p433 = pneg %p78
        %p434 = pneg %p75
        %s435 = smul.u32 32, %s21
        %p436 = scmp.lt.s32.totalorder %s435, 63
        %s437 = scalar_select %p436, %s435, 63
        %s438 = smul.addr %s437, 4
        %s439 = scalar_lea.vmem %s2, %s438
        %p440 = pneg %p104
        %p441 = pneg %p101
        %p442 = pneg %p125
        %p443 = pneg %p122
        %p444 = pneg %p146
        %p445 = pneg %p143
        %p446 = pneg %p167
        %p447 = pneg %p164
        %p448 = pneg %p193
        %p449 = pneg %p190
        %s450 = smul.u32 32, %s21
        %p451 = scmp.lt.s32.totalorder %s450, 63
        %s452 = scalar_select %p451, %s450, 63
        %s453 = smul.addr %s452, 8
        %s454 = scalar_lea.vmem %s6, %s453
        %s455 = smul.u32 32, %s21
        %s456 = smul.u32 2, %s22
        %s457 = smul.u32 32, %s22
        %p458 = scmp.lt.s32.totalorder %s457, 63
        %s459 = scalar_select %p458, %s457, 63
        %s460 = smul.addr %s459, 4
        %s461 = scalar_lea.vmem %s1, %s460
        %s462 = smul.u32 32, %s22
        %s463 = smul.u32 32, %s21
        %p464 = scmp.lt.s32.totalorder %s463, 63
        %s465 = scalar_select %p464, %s463, 63
        %s466 = smul.addr %s465, 4
        %s467 = scalar_lea.vmem %s2, %s466
        %s468 = smul.u32 32, %s21
        %s469 = smul.u32 32, %s21
        %p470 = scmp.lt.s32.totalorder %s469, 63
        %s471 = scalar_select %p470, %s469, 63
        %s472 = smul.addr %s471, 8
        %s473 = scalar_lea.vmem %s6, %s472
        %s474 = smul.u32 32, %s21
        %p476 = scmp.eq.s32.totalorder %s22, 0
        // Predicated region
        $region83: #{graphsage_second_forward.1} parent=77 // pred_check
          %p477 = pneg %p476
        $region84: #{graphsage_second_forward.1} parent=77 // pred_check_branch
          %479 = sbr.rel (%p477) target = $region86
        $region85: #{graphsage_second_forward.1} parent=77 // pred_region
          %480 = vst [vmem:[#allocation2] sm:$0xff] 0.0
          %481 = vst [vmem:[#allocation2 + $0x8] sm:$0xff] 0.0
          %482 = vst [vmem:[#allocation2 + $0x10] sm:$0xff] 0.0
          %483 = vst [vmem:[#allocation2 + $0x18] sm:$0xff] 0.0
          %484 = vst [vmem:[#allocation2 + $0x20] sm:$0xff] 0.0
          %485 = vst [vmem:[#allocation2 + $0x28] sm:$0xff] 0.0
          %486 = vst [vmem:[#allocation2 + $0x30] sm:$0xff] 0.0
          %487 = vst [vmem:[#allocation2 + $0x38] sm:$0xff] 0.0
          %488 = vst [vmem:[#allocation2 + $0x40] sm:$0xff] 0.0
          %489 = vst [vmem:[#allocation2 + $0x48] sm:$0xff] 0.0
          %490 = vst [vmem:[#allocation2 + $0x50] sm:$0xff] 0.0
          %491 = vst [vmem:[#allocation2 + $0x58] sm:$0xff] 0.0
          %492 = vst [vmem:[#allocation2 + $0x60] sm:$0xff] 0.0
          %493 = vst [vmem:[#allocation2 + $0x68] sm:$0xff] 0.0
          %494 = vst [vmem:[#allocation2 + $0x70] sm:$0xff] 0.0
          %495 = vst [vmem:[#allocation2 + $0x78] sm:$0xff] 0.0
          %496 = vst [vmem:[#allocation2 + $0x80] sm:$0xff] 0.0
          %497 = vst [vmem:[#allocation2 + $0x88] sm:$0xff] 0.0
          %498 = vst [vmem:[#allocation2 + $0x90] sm:$0xff] 0.0
          %499 = vst [vmem:[#allocation2 + $0x98] sm:$0xff] 0.0
          %500 = vst [vmem:[#allocation2 + $0xa0] sm:$0xff] 0.0
          %501 = vst [vmem:[#allocation2 + $0xa8] sm:$0xff] 0.0
          %502 = vst [vmem:[#allocation2 + $0xb0] sm:$0xff] 0.0
          %503 = vst [vmem:[#allocation2 + $0xb8] sm:$0xff] 0.0
          %504 = vst [vmem:[#allocation2 + $0xc0] sm:$0xff] 0.0
          %505 = vst [vmem:[#allocation2 + $0xc8] sm:$0xff] 0.0
          %506 = vst [vmem:[#allocation2 + $0xd0] sm:$0xff] 0.0
          %507 = vst [vmem:[#allocation2 + $0xd8] sm:$0xff] 0.0
          %508 = vst [vmem:[#allocation2 + $0xe0] sm:$0xff] 0.0
          %509 = vst [vmem:[#allocation2 + $0xe8] sm:$0xff] 0.0
          %510 = vst [vmem:[#allocation2 + $0xf0] sm:$0xff] 0.0
          %511 = vst [vmem:[#allocation2 + $0xf8] sm:$0xff] 0.0
        $region86: #{graphsage_second_forward.1} parent=77 // pred_fallthru
          _
        %v512 = vld [vmem:[#allocation2] sm:$0xff]
        %v513 = vld [vmem:[#allocation2 + $0x8] sm:$0xff]
        %v514 = vld [vmem:[#allocation2 + $0x10] sm:$0xff]
        %v515 = vld [vmem:[#allocation2 + $0x18] sm:$0xff]
        %v516 = vld [vmem:[#allocation2 + $0x20] sm:$0xff]
        %v517 = vld [vmem:[#allocation2 + $0x28] sm:$0xff]
        %v518 = vld [vmem:[#allocation2 + $0x30] sm:$0xff]
        %v519 = vld [vmem:[#allocation2 + $0x38] sm:$0xff]
        %v520 = vld [vmem:[#allocation2 + $0x40] sm:$0xff]
        %v521 = vld [vmem:[#allocation2 + $0x48] sm:$0xff]
        %v522 = vld [vmem:[#allocation2 + $0x50] sm:$0xff]
        %v523 = vld [vmem:[#allocation2 + $0x58] sm:$0xff]
        %v524 = vld [vmem:[#allocation2 + $0x60] sm:$0xff]
        %v525 = vld [vmem:[#allocation2 + $0x68] sm:$0xff]
        %v526 = vld [vmem:[#allocation2 + $0x70] sm:$0xff]
        %v527 = vld [vmem:[#allocation2 + $0x78] sm:$0xff]
        %v528 = vld [vmem:[#allocation2 + $0x80] sm:$0xff]
        %v529 = vld [vmem:[#allocation2 + $0x88] sm:$0xff]
        %v530 = vld [vmem:[#allocation2 + $0x90] sm:$0xff]
        %v531 = vld [vmem:[#allocation2 + $0x98] sm:$0xff]
        %v532 = vld [vmem:[#allocation2 + $0xa0] sm:$0xff]
        %v533 = vld [vmem:[#allocation2 + $0xa8] sm:$0xff]
        %v534 = vld [vmem:[#allocation2 + $0xb0] sm:$0xff]
        %v535 = vld [vmem:[#allocation2 + $0xb8] sm:$0xff]
        %v536 = vld [vmem:[#allocation2 + $0xc0] sm:$0xff]
        %v537 = vld [vmem:[#allocation2 + $0xc8] sm:$0xff]
        %v538 = vld [vmem:[#allocation2 + $0xd0] sm:$0xff]
        %v539 = vld [vmem:[#allocation2 + $0xd8] sm:$0xff]
        %v540 = vld [vmem:[#allocation2 + $0xe0] sm:$0xff]
        %v541 = vld [vmem:[#allocation2 + $0xe8] sm:$0xff]
        %v542 = vld [vmem:[#allocation2 + $0xf0] sm:$0xff]
        %v543 = vld [vmem:[#allocation2 + $0xf8] sm:$0xff]
        %v544 = vld [vmem:[%s418] sm:$0xff]
        %v545 = vld [vmem:[%s418 + $0x8] sm:$0xff]
        %v546 = vld [vmem:[%s418 + $0x10] sm:$0xff]
        %v547 = vld [vmem:[%s418 + $0x18] sm:$0xff]
        %v548 = vld [vmem:[%s418 + $0x20] sm:$0xff]
        %v549 = vld [vmem:[%s418 + $0x28] sm:$0xff]
        %v550 = vld [vmem:[%s418 + $0x30] sm:$0xff]
        %v551 = vld [vmem:[%s418 + $0x38] sm:$0xff]
        %v552 = vld [vmem:[%s418 + $0x40] sm:$0xff]
        %v553 = vld [vmem:[%s418 + $0x48] sm:$0xff]
        %v554 = vld [vmem:[%s418 + $0x50] sm:$0xff]
        %v555 = vld [vmem:[%s418 + $0x58] sm:$0xff]
        %v556 = vld [vmem:[%s418 + $0x60] sm:$0xff]
        %v557 = vld [vmem:[%s418 + $0x68] sm:$0xff]
        %v558 = vld [vmem:[%s418 + $0x70] sm:$0xff]
        %v559 = vld [vmem:[%s418 + $0x78] sm:$0xff]
        %v560 = vld [vmem:[%s418 + $0x80] sm:$0xff]
        %v561 = vld [vmem:[%s418 + $0x88] sm:$0xff]
        %v562 = vld [vmem:[%s418 + $0x90] sm:$0xff]
        %v563 = vld [vmem:[%s418 + $0x98] sm:$0xff]
        %v564 = vld [vmem:[%s418 + $0xa0] sm:$0xff]
        %v565 = vld [vmem:[%s418 + $0xa8] sm:$0xff]
        %v566 = vld [vmem:[%s418 + $0xb0] sm:$0xff]
        %v567 = vld [vmem:[%s418 + $0xb8] sm:$0xff]
        %v568 = vld [vmem:[%s418 + $0xc0] sm:$0xff]
        %v569 = vld [vmem:[%s418 + $0xc8] sm:$0xff]
        %v570 = vld [vmem:[%s418 + $0xd0] sm:$0xff]
        %v571 = vld [vmem:[%s418 + $0xd8] sm:$0xff]
        %v572 = vld [vmem:[%s418 + $0xe0] sm:$0xff]
        %v573 = vld [vmem:[%s418 + $0xe8] sm:$0xff]
        %v574 = vld [vmem:[%s418 + $0xf0] sm:$0xff]
        %v575 = vld [vmem:[%s418 + $0xf8] sm:$0xff]
        %v576 = vld [vmem:[%s461] sm:$0xf]
        %v577 = vld [vmem:[%s461 + $0x4] sm:$0xf]
        %v578 = vld [vmem:[%s461 + $0x8] sm:$0xf]
        %v579 = vld [vmem:[%s461 + $0xc] sm:$0xf]
        %v580 = vld [vmem:[%s461 + $0x10] sm:$0xf]
        %v581 = vld [vmem:[%s461 + $0x14] sm:$0xf]
        %v582 = vld [vmem:[%s461 + $0x18] sm:$0xf]
        %v583 = vld [vmem:[%s461 + $0x1c] sm:$0xf]
        %v584 = vld [vmem:[%s461 + $0x20] sm:$0xf]
        %v585 = vld [vmem:[%s461 + $0x24] sm:$0xf]
        %v586 = vld [vmem:[%s461 + $0x28] sm:$0xf]
        %v587 = vld [vmem:[%s461 + $0x2c] sm:$0xf]
        %v588 = vld [vmem:[%s461 + $0x30] sm:$0xf]
        %v589 = vld [vmem:[%s461 + $0x34] sm:$0xf]
        %v590 = vld [vmem:[%s461 + $0x38] sm:$0xf]
        %v591 = vld [vmem:[%s461 + $0x3c] sm:$0xf]
        %v592 = vld [vmem:[%s461 + $0x40] sm:$0xf]
        %v593 = vld [vmem:[%s461 + $0x44] sm:$0xf]
        %v594 = vld [vmem:[%s461 + $0x48] sm:$0xf]
        %v595 = vld [vmem:[%s461 + $0x4c] sm:$0xf]
        %v596 = vld [vmem:[%s461 + $0x50] sm:$0xf]
        %v597 = vld [vmem:[%s461 + $0x54] sm:$0xf]
        %v598 = vld [vmem:[%s461 + $0x58] sm:$0xf]
        %v599 = vld [vmem:[%s461 + $0x5c] sm:$0xf]
        %v600 = vld [vmem:[%s461 + $0x60] sm:$0xf]
        %v601 = vld [vmem:[%s461 + $0x64] sm:$0xf]
        %v602 = vld [vmem:[%s461 + $0x68] sm:$0xf]
        %v603 = vld [vmem:[%s461 + $0x6c] sm:$0xf]
        %v604 = vld [vmem:[%s461 + $0x70] sm:$0xf]
        %v605 = vld [vmem:[%s461 + $0x74] sm:$0xf]
        %v606 = vld [vmem:[%s461 + $0x78] sm:$0xf]
        %v607 = vld [vmem:[%s461 + $0x7c] sm:$0xf]
        %v640 = vunpack.c.l.b16 %v544
        %v641 = vunpack.c.h.b16 %v544
        %v642 = vunpack.c.l.b16 %v545
        %v643 = vunpack.c.h.b16 %v545
        %v644 = vunpack.c.l.b16 %v546
        %v645 = vunpack.c.h.b16 %v546
        %v646 = vunpack.c.l.b16 %v547
        %v647 = vunpack.c.h.b16 %v547
        %v648 = vunpack.c.l.b16 %v548
        %v649 = vunpack.c.h.b16 %v548
        %v650 = vunpack.c.l.b16 %v549
        %v651 = vunpack.c.h.b16 %v549
        %v652 = vunpack.c.l.b16 %v550
        %v653 = vunpack.c.h.b16 %v550
        %v654 = vunpack.c.l.b16 %v551
        %v655 = vunpack.c.h.b16 %v551
        %v656 = vunpack.c.l.b16 %v552
        %v657 = vunpack.c.h.b16 %v552
        %v658 = vunpack.c.l.b16 %v553
        %v659 = vunpack.c.h.b16 %v553
        %v660 = vunpack.c.l.b16 %v554
        %v661 = vunpack.c.h.b16 %v554
        %v662 = vunpack.c.l.b16 %v555
        %v663 = vunpack.c.h.b16 %v555
        %v664 = vunpack.c.l.b16 %v556
        %v665 = vunpack.c.h.b16 %v556
        %v666 = vunpack.c.l.b16 %v557
        %v667 = vunpack.c.h.b16 %v557
        %v668 = vunpack.c.l.b16 %v558
        %v669 = vunpack.c.h.b16 %v558
        %v670 = vunpack.c.l.b16 %v559
        %v671 = vunpack.c.h.b16 %v559
        %v672 = vunpack.c.l.b16 %v560
        %v673 = vunpack.c.h.b16 %v560
        %v674 = vunpack.c.l.b16 %v561
        %v675 = vunpack.c.h.b16 %v561
        %v676 = vunpack.c.l.b16 %v562
        %v677 = vunpack.c.h.b16 %v562
        %v678 = vunpack.c.l.b16 %v563
        %v679 = vunpack.c.h.b16 %v563
        %v680 = vunpack.c.l.b16 %v564
        %v681 = vunpack.c.h.b16 %v564
        %v682 = vunpack.c.l.b16 %v565
        %v683 = vunpack.c.h.b16 %v565
        %v684 = vunpack.c.l.b16 %v566
        %v685 = vunpack.c.h.b16 %v566
        %v686 = vunpack.c.l.b16 %v567
        %v687 = vunpack.c.h.b16 %v567
        %v688 = vunpack.c.l.b16 %v568
        %v689 = vunpack.c.h.b16 %v568
        %v690 = vunpack.c.l.b16 %v569
        %v691 = vunpack.c.h.b16 %v569
        %v692 = vunpack.c.l.b16 %v570
        %v693 = vunpack.c.h.b16 %v570
        %v694 = vunpack.c.l.b16 %v571
        %v695 = vunpack.c.h.b16 %v571
        %v696 = vunpack.c.l.b16 %v572
        %v697 = vunpack.c.h.b16 %v572
        %v698 = vunpack.c.l.b16 %v573
        %v699 = vunpack.c.h.b16 %v573
        %v700 = vunpack.c.l.b16 %v574
        %v701 = vunpack.c.h.b16 %v574
        %v702 = vunpack.c.l.b16 %v575
        %v703 = vunpack.c.h.b16 %v575
        %v704 = vpack.c.b16 %v642, %v640
        %v705 = vpack.c.b16 %v643, %v641
        %v706 = vpack.c.b16 %v646, %v644
        %v707 = vpack.c.b16 %v647, %v645
        %v708 = vpack.c.b16 %v650, %v648
        %v709 = vpack.c.b16 %v651, %v649
        %v710 = vpack.c.b16 %v654, %v652
        %v711 = vpack.c.b16 %v655, %v653
        %v712 = vpack.c.b16 %v658, %v656
        %v713 = vpack.c.b16 %v659, %v657
        %v714 = vpack.c.b16 %v662, %v660
        %v715 = vpack.c.b16 %v663, %v661
        %v716 = vpack.c.b16 %v666, %v664
        %v717 = vpack.c.b16 %v667, %v665
        %v718 = vpack.c.b16 %v670, %v668
        %v719 = vpack.c.b16 %v671, %v669
        %v720 = vpack.c.b16 %v674, %v672
        %v721 = vpack.c.b16 %v675, %v673
        %v722 = vpack.c.b16 %v678, %v676
        %v723 = vpack.c.b16 %v679, %v677
        %v724 = vpack.c.b16 %v682, %v680
        %v725 = vpack.c.b16 %v683, %v681
        %v726 = vpack.c.b16 %v686, %v684
        %v727 = vpack.c.b16 %v687, %v685
        %v728 = vpack.c.b16 %v690, %v688
        %v729 = vpack.c.b16 %v691, %v689
        %v730 = vpack.c.b16 %v694, %v692
        %v731 = vpack.c.b16 %v695, %v693
        %v732 = vpack.c.b16 %v698, %v696
        %v733 = vpack.c.b16 %v699, %v697
        %v734 = vpack.c.b16 %v702, %v700
        %v735 = vpack.c.b16 %v703, %v701
        %v800 = vunpack.c.l.b16 %v576
        %v801 = vunpack.c.l.b16 %v577
        %v802 = vunpack.c.l.b16 %v578
        %v803 = vunpack.c.l.b16 %v579
        %v804 = vunpack.c.l.b16 %v580
        %v805 = vunpack.c.l.b16 %v581
        %v806 = vunpack.c.l.b16 %v582
        %v807 = vunpack.c.l.b16 %v583
        %v808 = vunpack.c.l.b16 %v584
        %v809 = vunpack.c.l.b16 %v585
        %v810 = vunpack.c.l.b16 %v586
        %v811 = vunpack.c.l.b16 %v587
        %v812 = vunpack.c.l.b16 %v588
        %v813 = vunpack.c.l.b16 %v589
        %v814 = vunpack.c.l.b16 %v590
        %v815 = vunpack.c.l.b16 %v591
        %v816 = vunpack.c.l.b16 %v592
        %v817 = vunpack.c.l.b16 %v593
        %v818 = vunpack.c.l.b16 %v594
        %v819 = vunpack.c.l.b16 %v595
        %v820 = vunpack.c.l.b16 %v596
        %v821 = vunpack.c.l.b16 %v597
        %v822 = vunpack.c.l.b16 %v598
        %v823 = vunpack.c.l.b16 %v599
        %v824 = vunpack.c.l.b16 %v600
        %v825 = vunpack.c.l.b16 %v601
        %v826 = vunpack.c.l.b16 %v602
        %v827 = vunpack.c.l.b16 %v603
        %v828 = vunpack.c.l.b16 %v604
        %v829 = vunpack.c.l.b16 %v605
        %v830 = vunpack.c.l.b16 %v606
        %v831 = vunpack.c.l.b16 %v607
        %v832 = vpack.c.b16 %v801, %v800
        %v833 = vpack.c.b16 %v803, %v802
        %v834 = vpack.c.b16 %v805, %v804
        %v835 = vpack.c.b16 %v807, %v806
        %v836 = vpack.c.b16 %v809, %v808
        %v837 = vpack.c.b16 %v811, %v810
        %v838 = vpack.c.b16 %v813, %v812
        %v839 = vpack.c.b16 %v815, %v814
        %v840 = vpack.c.b16 %v817, %v816
        %v841 = vpack.c.b16 %v819, %v818
        %v842 = vpack.c.b16 %v821, %v820
        %v843 = vpack.c.b16 %v823, %v822
        %v844 = vpack.c.b16 %v825, %v824
        %v845 = vpack.c.b16 %v827, %v826
        %v846 = vpack.c.b16 %v829, %v828
        %v847 = vpack.c.b16 %v831, %v830
        %864 = vmatprep.subr.bf16.mxu0 0
        %865 = vmatpush1.bf16.msra.mxu0 %v832
        %866 = vmatprep.subr.bf16.mxu0 0
        %867 = vmatpush1.bf16.msra.mxu0 %v833
        %868 = vmatprep.subr.bf16.mxu0 0
        %869 = vmatpush1.bf16.msra.mxu0 %v834
        %870 = vmatprep.subr.bf16.mxu0 0
        %871 = vmatpush1.bf16.msra.mxu0 %v835
        %872 = vmatprep.subr.bf16.mxu0 0
        %873 = vmatpush1.bf16.msra.mxu0 %v836
        %874 = vmatprep.subr.bf16.mxu0 0
        %875 = vmatpush1.bf16.msra.mxu0 %v837
        %876 = vmatprep.subr.bf16.mxu0 0
        %877 = vmatpush1.bf16.msra.mxu0 %v838
        %878 = vmatprep.subr.bf16.mxu0 0
        %879 = vmatpush1.bf16.msra.mxu0 %v839
        %880 = vmatprep.subr.bf16.mxu0 0
        %881 = vmatpush1.bf16.msra.mxu0 %v840
        %882 = vmatprep.subr.bf16.mxu0 0
        %883 = vmatpush1.bf16.msra.mxu0 %v841
        %884 = vmatprep.subr.bf16.mxu0 0
        %885 = vmatpush1.bf16.msra.mxu0 %v842
        %886 = vmatprep.subr.bf16.mxu0 0
        %887 = vmatpush1.bf16.msra.mxu0 %v843
        %888 = vmatprep.subr.bf16.mxu0 0
        %889 = vmatpush1.bf16.msra.mxu0 %v844
        %890 = vmatprep.subr.bf16.mxu0 0
        %891 = vmatpush1.bf16.msra.mxu0 %v845
        %892 = vmatprep.subr.bf16.mxu0 0
        %893 = vmatpush1.bf16.msra.mxu0 %v846
        %894 = vmatprep.subr.bf16.mxu0 0
        %895 = vmatpush1.bf16.msra.mxu0 %v847
        %896 = vmatprep.mubr.bf16.mxu0 %v705
        %897 = vmatmul.mubr.bf16.gmra.mrb[0].mxu0 %v704
        %v898 = vpop.f32.mrb[0].mxu0
        %v899 = vadd.f32 0.0, %v898
        %v900 = vpop.f32.mrb[0].mxu0
        %v901 = vpop.f32.mrb[0].mxu0
        %v902 = vadd.f32 0.0, %v901
        %v903 = vpop.f32.mrb[0].mxu0
        %904 = vmatprep.mubr.bf16.mxu0 %v707
        %905 = vmatmul.mubr.bf16.gmra.mrb[0].mxu0 %v706
        %v906 = vpop.f32.mrb[0].mxu0
        %v907 = vadd.f32 0.0, %v906
        %v908 = vpop.f32.mrb[0].mxu0
        %v909 = vpop.f32.mrb[0].mxu0
        %v910 = vadd.f32 0.0, %v909
        %v911 = vpop.f32.mrb[0].mxu0
        %912 = vmatprep.mubr.bf16.mxu0 %v709
        %913 = vmatmul.mubr.bf16.gmra.mrb[0].mxu0 %v708
        %v914 = vpop.f32.mrb[0].mxu0
        %v915 = vadd.f32 0.0, %v914
        %v916 = vpop.f32.mrb[0].mxu0
        %v917 = vpop.f32.mrb[0].mxu0
        %v918 = vadd.f32 0.0, %v917
        %v919 = vpop.f32.mrb[0].mxu0
        %920 = vmatprep.mubr.bf16.mxu0 %v711
        %921 = vmatmul.mubr.bf16.gmra.mrb[0].mxu0 %v710
        %v922 = vpop.f32.mrb[0].mxu0
        %v923 = vadd.f32 0.0, %v922
        %v924 = vpop.f32.mrb[0].mxu0
        %v925 = vpop.f32.mrb[0].mxu0
        %v926 = vadd.f32 0.0, %v925
        %v927 = vpop.f32.mrb[0].mxu0
        %928 = vmatprep.mubr.bf16.mxu0 %v713
        %929 = vmatmul.mubr.bf16.gmra.mrb[0].mxu0 %v712
        %v930 = vpop.f32.mrb[0].mxu0
        %v931 = vadd.f32 0.0, %v930
        %v932 = vpop.f32.mrb[0].mxu0
        %v933 = vpop.f32.mrb[0].mxu0
        %v934 = vadd.f32 0.0, %v933
        %v935 = vpop.f32.mrb[0].mxu0
        %936 = vmatprep.mubr.bf16.mxu0 %v715
        %937 = vmatmul.mubr.bf16.gmra.mrb[0].mxu0 %v714
        %v938 = vpop.f32.mrb[0].mxu0
        %v939 = vadd.f32 0.0, %v938
        %v940 = vpop.f32.mrb[0].mxu0
        %v941 = vpop.f32.mrb[0].mxu0
        %v942 = vadd.f32 0.0, %v941
        %v943 = vpop.f32.mrb[0].mxu0
        %944 = vmatprep.mubr.bf16.mxu0 %v717
        %945 = vmatmul.mubr.bf16.gmra.mrb[0].mxu0 %v716
        %v946 = vpop.f32.mrb[0].mxu0
        %v947 = vadd.f32 0.0, %v946
        %v948 = vpop.f32.mrb[0].mxu0
        %v949 = vpop.f32.mrb[0].mxu0
        %v950 = vadd.f32 0.0, %v949
        %v951 = vpop.f32.mrb[0].mxu0
        %952 = vmatprep.mubr.bf16.mxu0 %v719
        %953 = vmatmul.mubr.bf16.gmra.mrb[0].mxu0 %v718
        %v954 = vpop.f32.mrb[0].mxu0
        %v955 = vadd.f32 0.0, %v954
        %v956 = vpop.f32.mrb[0].mxu0
        %v957 = vpop.f32.mrb[0].mxu0
        %v958 = vadd.f32 0.0, %v957
        %v959 = vpop.f32.mrb[0].mxu0
        %960 = vmatprep.mubr.bf16.mxu0 %v721
        %961 = vmatmul.mubr.bf16.gmra.mrb[0].mxu0 %v720
        %v962 = vpop.f32.mrb[0].mxu0
        %v963 = vadd.f32 0.0, %v962
        %v964 = vpop.f32.mrb[0].mxu0
        %v965 = vpop.f32.mrb[0].mxu0
        %v966 = vadd.f32 0.0, %v965
        %v967 = vpop.f32.mrb[0].mxu0
        %968 = vmatprep.mubr.bf16.mxu0 %v723
        %969 = vmatmul.mubr.bf16.gmra.mrb[0].mxu0 %v722
        %v970 = vpop.f32.mrb[0].mxu0
        %v971 = vadd.f32 0.0, %v970
        %v972 = vpop.f32.mrb[0].mxu0
        %v973 = vpop.f32.mrb[0].mxu0
        %v974 = vadd.f32 0.0, %v973
        %v975 = vpop.f32.mrb[0].mxu0
        %976 = vmatprep.mubr.bf16.mxu0 %v725
        %977 = vmatmul.mubr.bf16.gmra.mrb[0].mxu0 %v724
        %v978 = vpop.f32.mrb[0].mxu0
        %v979 = vadd.f32 0.0, %v978
        %v980 = vpop.f32.mrb[0].mxu0
        %v981 = vpop.f32.mrb[0].mxu0
        %v982 = vadd.f32 0.0, %v981
        %v983 = vpop.f32.mrb[0].mxu0
        %984 = vmatprep.mubr.bf16.mxu0 %v727
        %985 = vmatmul.mubr.bf16.gmra.mrb[0].mxu0 %v726
        %v986 = vpop.f32.mrb[0].mxu0
        %v987 = vadd.f32 0.0, %v986
        %v988 = vpop.f32.mrb[0].mxu0
        %v989 = vpop.f32.mrb[0].mxu0
        %v990 = vadd.f32 0.0, %v989
        %v991 = vpop.f32.mrb[0].mxu0
        %992 = vmatprep.mubr.bf16.mxu0 %v729
        %993 = vmatmul.mubr.bf16.gmra.mrb[0].mxu0 %v728
        %v994 = vpop.f32.mrb[0].mxu0
        %v995 = vadd.f32 0.0, %v994
        %v996 = vpop.f32.mrb[0].mxu0
        %v997 = vpop.f32.mrb[0].mxu0
        %v998 = vadd.f32 0.0, %v997
        %v999 = vpop.f32.mrb[0].mxu0
        %1000 = vmatprep.mubr.bf16.mxu0 %v731
        %1001 = vmatmul.mubr.bf16.gmra.mrb[0].mxu0 %v730
        %v1002 = vpop.f32.mrb[0].mxu0
        %v1003 = vadd.f32 0.0, %v1002
        %v1004 = vpop.f32.mrb[0].mxu0
        %v1005 = vpop.f32.mrb[0].mxu0
        %v1006 = vadd.f32 0.0, %v1005
        %v1007 = vpop.f32.mrb[0].mxu0
        %1008 = vmatprep.mubr.bf16.mxu0 %v733
        %1009 = vmatmul.mubr.bf16.gmra.mrb[0].mxu0 %v732
        %v1010 = vpop.f32.mrb[0].mxu0
        %v1011 = vadd.f32 0.0, %v1010
        %v1012 = vpop.f32.mrb[0].mxu0
        %v1013 = vpop.f32.mrb[0].mxu0
        %v1014 = vadd.f32 0.0, %v1013
        %v1015 = vpop.f32.mrb[0].mxu0
        %1016 = vmatprep.mubr.bf16.mxu0 %v735
        %1017 = vmatmul.mubr.bf16.gmra.mrb[0].mxu0 %v734
        %v1018 = vpop.f32.mrb[0].mxu0
        %v1019 = vadd.f32 0.0, %v1018
        %v1020 = vpop.f32.mrb[0].mxu0
        %v1021 = vpop.f32.mrb[0].mxu0
        %v1022 = vadd.f32 0.0, %v1021
        %v1023 = vpop.f32.mrb[0].mxu0
        %1024 = vdwg.mxu0
        %v1025 = vadd.f32 %v512, %v899
        %v1026 = vadd.f32 %v513, %v902
        %v1027 = vadd.f32 %v514, %v907
        %v1028 = vadd.f32 %v515, %v910
        %v1029 = vadd.f32 %v516, %v915
        %v1030 = vadd.f32 %v517, %v918
        %v1031 = vadd.f32 %v518, %v923
        %v1032 = vadd.f32 %v519, %v926
        %v1033 = vadd.f32 %v520, %v931
        %v1034 = vadd.f32 %v521, %v934
        %v1035 = vadd.f32 %v522, %v939
        %v1036 = vadd.f32 %v523, %v942
        %v1037 = vadd.f32 %v524, %v947
        %v1038 = vadd.f32 %v525, %v950
        %v1039 = vadd.f32 %v526, %v955
        %v1040 = vadd.f32 %v527, %v958
        %v1041 = vadd.f32 %v528, %v963
        %v1042 = vadd.f32 %v529, %v966
        %v1043 = vadd.f32 %v530, %v971
        %v1044 = vadd.f32 %v531, %v974
        %v1045 = vadd.f32 %v532, %v979
        %v1046 = vadd.f32 %v533, %v982
        %v1047 = vadd.f32 %v534, %v987
        %v1048 = vadd.f32 %v535, %v990
        %v1049 = vadd.f32 %v536, %v995
        %v1050 = vadd.f32 %v537, %v998
        %v1051 = vadd.f32 %v538, %v1003
        %v1052 = vadd.f32 %v539, %v1006
        %v1053 = vadd.f32 %v540, %v1011
        %v1054 = vadd.f32 %v541, %v1014
        %v1055 = vadd.f32 %v542, %v1019
        %v1056 = vadd.f32 %v543, %v1022
        %1057 = vst [vmem:[#allocation2] sm:$0xff] %v1025
        %1058 = vst [vmem:[#allocation2 + $0x8] sm:$0xff] %v1026
        %1059 = vst [vmem:[#allocation2 + $0x10] sm:$0xff] %v1027
        %1060 = vst [vmem:[#allocation2 + $0x18] sm:$0xff] %v1028
        %1061 = vst [vmem:[#allocation2 + $0x20] sm:$0xff] %v1029
        %1062 = vst [vmem:[#allocation2 + $0x28] sm:$0xff] %v1030
        %1063 = vst [vmem:[#allocation2 + $0x30] sm:$0xff] %v1031
        %1064 = vst [vmem:[#allocation2 + $0x38] sm:$0xff] %v1032
        %1065 = vst [vmem:[#allocation2 + $0x40] sm:$0xff] %v1033
        %1066 = vst [vmem:[#allocation2 + $0x48] sm:$0xff] %v1034
        %1067 = vst [vmem:[#allocation2 + $0x50] sm:$0xff] %v1035
        %1068 = vst [vmem:[#allocation2 + $0x58] sm:$0xff] %v1036
        %1069 = vst [vmem:[#allocation2 + $0x60] sm:$0xff] %v1037
        %1070 = vst [vmem:[#allocation2 + $0x68] sm:$0xff] %v1038
        %1071 = vst [vmem:[#allocation2 + $0x70] sm:$0xff] %v1039
        %1072 = vst [vmem:[#allocation2 + $0x78] sm:$0xff] %v1040
        %1073 = vst [vmem:[#allocation2 + $0x80] sm:$0xff] %v1041
        %1074 = vst [vmem:[#allocation2 + $0x88] sm:$0xff] %v1042
        %1075 = vst [vmem:[#allocation2 + $0x90] sm:$0xff] %v1043
        %1076 = vst [vmem:[#allocation2 + $0x98] sm:$0xff] %v1044
        %1077 = vst [vmem:[#allocation2 + $0xa0] sm:$0xff] %v1045
        %1078 = vst [vmem:[#allocation2 + $0xa8] sm:$0xff] %v1046
        %1079 = vst [vmem:[#allocation2 + $0xb0] sm:$0xff] %v1047
        %1080 = vst [vmem:[#allocation2 + $0xb8] sm:$0xff] %v1048
        %1081 = vst [vmem:[#allocation2 + $0xc0] sm:$0xff] %v1049
        %1082 = vst [vmem:[#allocation2 + $0xc8] sm:$0xff] %v1050
        %1083 = vst [vmem:[#allocation2 + $0xd0] sm:$0xff] %v1051
        %1084 = vst [vmem:[#allocation2 + $0xd8] sm:$0xff] %v1052
        %1085 = vst [vmem:[#allocation2 + $0xe0] sm:$0xff] %v1053
        %1086 = vst [vmem:[#allocation2 + $0xe8] sm:$0xff] %v1054
        %1087 = vst [vmem:[#allocation2 + $0xf0] sm:$0xff] %v1055
        %1088 = vst [vmem:[#allocation2 + $0xf8] sm:$0xff] %v1056
        %p1089 = scmp.eq.s32.totalorder %s22, 1
        // Predicated region
        $region87: #{graphsage_second_forward.1} parent=77 // pred_check
          %p1090 = pneg %p1089
        $region88: #{graphsage_second_forward.1} parent=77 // pred_check_branch
          %1092 = sbr.rel (%p1090) target = $region90
        $region89: #{graphsage_second_forward.1} parent=77 // pred_region
          %v1093 = vld [vmem:[#allocation2] sm:$0xff]
          %v1094 = vld [vmem:[#allocation2 + $0x8] sm:$0xff]
          %v1095 = vld [vmem:[#allocation2 + $0x10] sm:$0xff]
          %v1096 = vld [vmem:[#allocation2 + $0x18] sm:$0xff]
          %v1097 = vld [vmem:[#allocation2 + $0x20] sm:$0xff]
          %v1098 = vld [vmem:[#allocation2 + $0x28] sm:$0xff]
          %v1099 = vld [vmem:[#allocation2 + $0x30] sm:$0xff]
          %v1100 = vld [vmem:[#allocation2 + $0x38] sm:$0xff]
          %v1101 = vld [vmem:[#allocation2 + $0x40] sm:$0xff]
          %v1102 = vld [vmem:[#allocation2 + $0x48] sm:$0xff]
          %v1103 = vld [vmem:[#allocation2 + $0x50] sm:$0xff]
          %v1104 = vld [vmem:[#allocation2 + $0x58] sm:$0xff]
          %v1105 = vld [vmem:[#allocation2 + $0x60] sm:$0xff]
          %v1106 = vld [vmem:[#allocation2 + $0x68] sm:$0xff]
          %v1107 = vld [vmem:[#allocation2 + $0x70] sm:$0xff]
          %v1108 = vld [vmem:[#allocation2 + $0x78] sm:$0xff]
          %v1109 = vld [vmem:[#allocation2 + $0x80] sm:$0xff]
          %v1110 = vld [vmem:[#allocation2 + $0x88] sm:$0xff]
          %v1111 = vld [vmem:[#allocation2 + $0x90] sm:$0xff]
          %v1112 = vld [vmem:[#allocation2 + $0x98] sm:$0xff]
          %v1113 = vld [vmem:[#allocation2 + $0xa0] sm:$0xff]
          %v1114 = vld [vmem:[#allocation2 + $0xa8] sm:$0xff]
          %v1115 = vld [vmem:[#allocation2 + $0xb0] sm:$0xff]
          %v1116 = vld [vmem:[#allocation2 + $0xb8] sm:$0xff]
          %v1117 = vld [vmem:[#allocation2 + $0xc0] sm:$0xff]
          %v1118 = vld [vmem:[#allocation2 + $0xc8] sm:$0xff]
          %v1119 = vld [vmem:[#allocation2 + $0xd0] sm:$0xff]
          %v1120 = vld [vmem:[#allocation2 + $0xd8] sm:$0xff]
          %v1121 = vld [vmem:[#allocation2 + $0xe0] sm:$0xff]
          %v1122 = vld [vmem:[#allocation2 + $0xe8] sm:$0xff]
          %v1123 = vld [vmem:[#allocation2 + $0xf0] sm:$0xff]
          %v1124 = vld [vmem:[#allocation2 + $0xf8] sm:$0xff]
          %v1125 = vmax.f32 %v1093, 0.0
          %v1126 = vmax.f32 %v1094, 0.0
          %v1127 = vmax.f32 %v1095, 0.0
          %v1128 = vmax.f32 %v1096, 0.0
          %v1129 = vmax.f32 %v1097, 0.0
          %v1130 = vmax.f32 %v1098, 0.0
          %v1131 = vmax.f32 %v1099, 0.0
          %v1132 = vmax.f32 %v1100, 0.0
          %v1133 = vmax.f32 %v1101, 0.0
          %v1134 = vmax.f32 %v1102, 0.0
          %v1135 = vmax.f32 %v1103, 0.0
          %v1136 = vmax.f32 %v1104, 0.0
          %v1137 = vmax.f32 %v1105, 0.0
          %v1138 = vmax.f32 %v1106, 0.0
          %v1139 = vmax.f32 %v1107, 0.0
          %v1140 = vmax.f32 %v1108, 0.0
          %v1141 = vmax.f32 %v1109, 0.0
          %v1142 = vmax.f32 %v1110, 0.0
          %v1143 = vmax.f32 %v1111, 0.0
          %v1144 = vmax.f32 %v1112, 0.0
          %v1145 = vmax.f32 %v1113, 0.0
          %v1146 = vmax.f32 %v1114, 0.0
          %v1147 = vmax.f32 %v1115, 0.0
          %v1148 = vmax.f32 %v1116, 0.0
          %v1149 = vmax.f32 %v1117, 0.0
          %v1150 = vmax.f32 %v1118, 0.0
          %v1151 = vmax.f32 %v1119, 0.0
          %v1152 = vmax.f32 %v1120, 0.0
          %v1153 = vmax.f32 %v1121, 0.0
          %v1154 = vmax.f32 %v1122, 0.0
          %v1155 = vmax.f32 %v1123, 0.0
          %v1156 = vmax.f32 %v1124, 0.0
          %v1157 = vpack.c.bf16 %v1126, %v1125
          %v1158 = vpack.c.bf16 %v1128, %v1127
          %v1159 = vpack.c.bf16 %v1130, %v1129
          %v1160 = vpack.c.bf16 %v1132, %v1131
          %v1161 = vpack.c.bf16 %v1134, %v1133
          %v1162 = vpack.c.bf16 %v1136, %v1135
          %v1163 = vpack.c.bf16 %v1138, %v1137
          %v1164 = vpack.c.bf16 %v1140, %v1139
          %v1165 = vpack.c.bf16 %v1142, %v1141
          %v1166 = vpack.c.bf16 %v1144, %v1143
          %v1167 = vpack.c.bf16 %v1146, %v1145
          %v1168 = vpack.c.bf16 %v1148, %v1147
          %v1169 = vpack.c.bf16 %v1150, %v1149
          %v1170 = vpack.c.bf16 %v1152, %v1151
          %v1171 = vpack.c.bf16 %v1154, %v1153
          %v1172 = vpack.c.bf16 %v1156, %v1155
          %v1173 = vld [vmem:[%s467] sm:$0xf]
          %v1174 = vld [vmem:[%s467 + $0x4] sm:$0xf]
          %v1175 = vld [vmem:[%s467 + $0x8] sm:$0xf]
          %v1176 = vld [vmem:[%s467 + $0xc] sm:$0xf]
          %v1177 = vld [vmem:[%s467 + $0x10] sm:$0xf]
          %v1178 = vld [vmem:[%s467 + $0x14] sm:$0xf]
          %v1179 = vld [vmem:[%s467 + $0x18] sm:$0xf]
          %v1180 = vld [vmem:[%s467 + $0x1c] sm:$0xf]
          %v1181 = vld [vmem:[%s467 + $0x20] sm:$0xf]
          %v1182 = vld [vmem:[%s467 + $0x24] sm:$0xf]
          %v1183 = vld [vmem:[%s467 + $0x28] sm:$0xf]
          %v1184 = vld [vmem:[%s467 + $0x2c] sm:$0xf]
          %v1185 = vld [vmem:[%s467 + $0x30] sm:$0xf]
          %v1186 = vld [vmem:[%s467 + $0x34] sm:$0xf]
          %v1187 = vld [vmem:[%s467 + $0x38] sm:$0xf]
          %v1188 = vld [vmem:[%s467 + $0x3c] sm:$0xf]
          %v1189 = vld [vmem:[%s467 + $0x40] sm:$0xf]
          %v1190 = vld [vmem:[%s467 + $0x44] sm:$0xf]
          %v1191 = vld [vmem:[%s467 + $0x48] sm:$0xf]
          %v1192 = vld [vmem:[%s467 + $0x4c] sm:$0xf]
          %v1193 = vld [vmem:[%s467 + $0x50] sm:$0xf]
          %v1194 = vld [vmem:[%s467 + $0x54] sm:$0xf]
          %v1195 = vld [vmem:[%s467 + $0x58] sm:$0xf]
          %v1196 = vld [vmem:[%s467 + $0x5c] sm:$0xf]
          %v1197 = vld [vmem:[%s467 + $0x60] sm:$0xf]
          %v1198 = vld [vmem:[%s467 + $0x64] sm:$0xf]
          %v1199 = vld [vmem:[%s467 + $0x68] sm:$0xf]
          %v1200 = vld [vmem:[%s467 + $0x6c] sm:$0xf]
          %v1201 = vld [vmem:[%s467 + $0x70] sm:$0xf]
          %v1202 = vld [vmem:[%s467 + $0x74] sm:$0xf]
          %v1203 = vld [vmem:[%s467 + $0x78] sm:$0xf]
          %v1204 = vld [vmem:[%s467 + $0x7c] sm:$0xf]
          %v1205 = vld [vmem:[%s3] sm:$0xf]
          %v1206 = vld [vmem:[%s3 + $0x4] sm:$0xf]
          %v1207 = vld [vmem:[%s3 + $0x8] sm:$0xf]
          %v1208 = vld [vmem:[%s3 + $0xc] sm:$0xf]
          %v1209 = vld [vmem:[%s3 + $0x10] sm:$0xf]
          %v1210 = vld [vmem:[%s3 + $0x14] sm:$0xf]
          %v1211 = vld [vmem:[%s3 + $0x18] sm:$0xf]
          %v1212 = vld [vmem:[%s3 + $0x1c] sm:$0xf]
          %v1213 = vld [vmem:[%s3 + $0x20] sm:$0xf]
          %v1214 = vld [vmem:[%s3 + $0x24] sm:$0xf]
          %v1215 = vld [vmem:[%s3 + $0x28] sm:$0xf]
          %v1216 = vld [vmem:[%s3 + $0x2c] sm:$0xf]
          %v1217 = vld [vmem:[%s3 + $0x30] sm:$0xf]
          %v1218 = vld [vmem:[%s3 + $0x34] sm:$0xf]
          %v1219 = vld [vmem:[%s3 + $0x38] sm:$0xf]
          %v1220 = vld [vmem:[%s3 + $0x3c] sm:$0xf]
          %v1221 = vld [vmem:[%s4] sm:$0xf]
          %v1222 = vld [vmem:[%s4 + $0x4] sm:$0xf]
          %v1223 = vld [vmem:[%s4 + $0x8] sm:$0xf]
          %v1224 = vld [vmem:[%s4 + $0xc] sm:$0xf]
          %v1225 = vld [vmem:[%s4 + $0x10] sm:$0xf]
          %v1226 = vld [vmem:[%s4 + $0x14] sm:$0xf]
          %v1227 = vld [vmem:[%s4 + $0x18] sm:$0xf]
          %v1228 = vld [vmem:[%s4 + $0x1c] sm:$0xf]
          %v1229 = vld [vmem:[%s4 + $0x20] sm:$0xf]
          %v1230 = vld [vmem:[%s4 + $0x24] sm:$0xf]
          %v1231 = vld [vmem:[%s4 + $0x28] sm:$0xf]
          %v1232 = vld [vmem:[%s4 + $0x2c] sm:$0xf]
          %v1233 = vld [vmem:[%s4 + $0x30] sm:$0xf]
          %v1234 = vld [vmem:[%s4 + $0x34] sm:$0xf]
          %v1235 = vld [vmem:[%s4 + $0x38] sm:$0xf]
          %v1236 = vld [vmem:[%s4 + $0x3c] sm:$0xf]
          %v1253 = vunpack.c.l.b16 %v1221
          %v1254 = vunpack.c.l.b16 %v1222
          %v1255 = vunpack.c.l.b16 %v1223
          %v1256 = vunpack.c.l.b16 %v1224
          %v1257 = vunpack.c.l.b16 %v1225
          %v1258 = vunpack.c.l.b16 %v1226
          %v1259 = vunpack.c.l.b16 %v1227
          %v1260 = vunpack.c.l.b16 %v1228
          %v1261 = vunpack.c.l.b16 %v1229
          %v1262 = vunpack.c.l.b16 %v1230
          %v1263 = vunpack.c.l.b16 %v1231
          %v1264 = vunpack.c.l.b16 %v1232
          %v1265 = vunpack.c.l.b16 %v1233
          %v1266 = vunpack.c.l.b16 %v1234
          %v1267 = vunpack.c.l.b16 %v1235
          %v1268 = vunpack.c.l.b16 %v1236
          %v1269 = vpack.c.b16 %v1254, %v1253
          %v1270 = vpack.c.b16 %v1256, %v1255
          %v1271 = vpack.c.b16 %v1258, %v1257
          %v1272 = vpack.c.b16 %v1260, %v1259
          %v1273 = vpack.c.b16 %v1262, %v1261
          %v1274 = vpack.c.b16 %v1264, %v1263
          %v1275 = vpack.c.b16 %v1266, %v1265
          %v1276 = vpack.c.b16 %v1268, %v1267
          %1285 = vmatprep.subr.bf16.mxu0 0
          %1286 = vmatpush1.bf16.msra.mxu0 %v1269
          %1287 = vmatprep.subr.bf16.mxu0 0
          %1288 = vmatpush1.bf16.msra.mxu0 %v1270
          %1289 = vmatprep.subr.bf16.mxu0 0
          %1290 = vmatpush1.bf16.msra.mxu0 %v1271
          %1291 = vmatprep.subr.bf16.mxu0 0
          %1292 = vmatpush1.bf16.msra.mxu0 %v1272
          %1293 = vmatprep.subr.bf16.mxu0 0
          %1294 = vmatpush1.bf16.msra.mxu0 %v1273
          %1295 = vmatprep.subr.bf16.mxu0 0
          %1296 = vmatpush1.bf16.msra.mxu0 %v1274
          %1297 = vmatprep.subr.bf16.mxu0 0
          %1298 = vmatpush1.bf16.msra.mxu0 %v1275
          %1299 = vmatprep.subr.bf16.mxu0 0
          %1300 = vmatpush1.bf16.msra.mxu0 %v1276
          %1301 = vmatprep.subr.bf16.mxu0 0
          %1302 = vmatpush1.bf16.msra.mxu0 0
          %1303 = vmatprep.subr.bf16.mxu0 0
          %1304 = vmatpush1.bf16.msra.mxu0 0
          %1305 = vmatprep.subr.bf16.mxu0 0
          %1306 = vmatpush1.bf16.msra.mxu0 0
          %1307 = vmatprep.subr.bf16.mxu0 0
          %1308 = vmatpush1.bf16.msra.mxu0 0
          %1309 = vmatprep.subr.bf16.mxu0 0
          %1310 = vmatpush1.bf16.msra.mxu0 0
          %1311 = vmatprep.subr.bf16.mxu0 0
          %1312 = vmatpush1.bf16.msra.mxu0 0
          %1313 = vmatprep.subr.bf16.mxu0 0
          %1314 = vmatpush1.bf16.msra.mxu0 0
          %1315 = vmatprep.subr.bf16.mxu0 0
          %1316 = vmatpush1.bf16.msra.mxu0 0
          %1317 = vmatprep.mubr.bf16.mxu0 0
          %1318 = vmatmul.mubr.bf16.gmra.mrb[0].mxu0 %v1157
          %v1319 = vpop.f32.mrb[0].mxu0
          %v1320 = vadd.f32 0.0, %v1319
          %v1321 = vpop.f32.mrb[0].mxu0
          %v1322 = vpop.f32.mrb[0].mxu0
          %v1323 = vadd.f32 0.0, %v1322
          %v1324 = vpop.f32.mrb[0].mxu0
          %1325 = vmatprep.mubr.bf16.mxu0 0
          %1326 = vmatmul.mubr.bf16.gmra.mrb[0].mxu0 %v1158
          %v1327 = vpop.f32.mrb[0].mxu0
          %v1328 = vadd.f32 0.0, %v1327
          %v1329 = vpop.f32.mrb[0].mxu0
          %v1330 = vpop.f32.mrb[0].mxu0
          %v1331 = vadd.f32 0.0, %v1330
          %v1332 = vpop.f32.mrb[0].mxu0
          %1333 = vmatprep.mubr.bf16.mxu0 0
          %1334 = vmatmul.mubr.bf16.gmra.mrb[0].mxu0 %v1159
          %v1335 = vpop.f32.mrb[0].mxu0
          %v1336 = vadd.f32 0.0, %v1335
          %v1337 = vpop.f32.mrb[0].mxu0
          %v1338 = vpop.f32.mrb[0].mxu0
          %v1339 = vadd.f32 0.0, %v1338
          %v1340 = vpop.f32.mrb[0].mxu0
          %1341 = vmatprep.mubr.bf16.mxu0 0
          %1342 = vmatmul.mubr.bf16.gmra.mrb[0].mxu0 %v1160
          %v1343 = vpop.f32.mrb[0].mxu0
          %v1344 = vadd.f32 0.0, %v1343
          %v1345 = vpop.f32.mrb[0].mxu0
          %v1346 = vpop.f32.mrb[0].mxu0
          %v1347 = vadd.f32 0.0, %v1346
          %v1348 = vpop.f32.mrb[0].mxu0
          %1349 = vmatprep.mubr.bf16.mxu0 0
          %1350 = vmatmul.mubr.bf16.gmra.mrb[0].mxu0 %v1161
          %v1351 = vpop.f32.mrb[0].mxu0
          %v1352 = vadd.f32 0.0, %v1351
          %v1353 = vpop.f32.mrb[0].mxu0
          %v1354 = vpop.f32.mrb[0].mxu0
          %v1355 = vadd.f32 0.0, %v1354
          %v1356 = vpop.f32.mrb[0].mxu0
          %1357 = vmatprep.mubr.bf16.mxu0 0
          %1358 = vmatmul.mubr.bf16.gmra.mrb[0].mxu0 %v1162
          %v1359 = vpop.f32.mrb[0].mxu0
          %v1360 = vadd.f32 0.0, %v1359
          %v1361 = vpop.f32.mrb[0].mxu0
          %v1362 = vpop.f32.mrb[0].mxu0
          %v1363 = vadd.f32 0.0, %v1362
          %v1364 = vpop.f32.mrb[0].mxu0
          %1365 = vmatprep.mubr.bf16.mxu0 0
          %1366 = vmatmul.mubr.bf16.gmra.mrb[0].mxu0 %v1163
          %v1367 = vpop.f32.mrb[0].mxu0
          %v1368 = vadd.f32 0.0, %v1367
          %v1369 = vpop.f32.mrb[0].mxu0
          %v1370 = vpop.f32.mrb[0].mxu0
          %v1371 = vadd.f32 0.0, %v1370
          %v1372 = vpop.f32.mrb[0].mxu0
          %1373 = vmatprep.mubr.bf16.mxu0 0
          %1374 = vmatmul.mubr.bf16.gmra.mrb[0].mxu0 %v1164
          %v1375 = vpop.f32.mrb[0].mxu0
          %v1376 = vadd.f32 0.0, %v1375
          %v1377 = vpop.f32.mrb[0].mxu0
          %v1378 = vpop.f32.mrb[0].mxu0
          %v1379 = vadd.f32 0.0, %v1378
          %v1380 = vpop.f32.mrb[0].mxu0
          %1381 = vmatprep.mubr.bf16.mxu0 0
          %1382 = vmatmul.mubr.bf16.gmra.mrb[0].mxu0 %v1165
          %v1383 = vpop.f32.mrb[0].mxu0
          %v1384 = vadd.f32 0.0, %v1383
          %v1385 = vpop.f32.mrb[0].mxu0
          %v1386 = vpop.f32.mrb[0].mxu0
          %v1387 = vadd.f32 0.0, %v1386
          %v1388 = vpop.f32.mrb[0].mxu0
          %1389 = vmatprep.mubr.bf16.mxu0 0
          %1390 = vmatmul.mubr.bf16.gmra.mrb[0].mxu0 %v1166
          %v1391 = vpop.f32.mrb[0].mxu0
          %v1392 = vadd.f32 0.0, %v1391
          %v1393 = vpop.f32.mrb[0].mxu0
          %v1394 = vpop.f32.mrb[0].mxu0
          %v1395 = vadd.f32 0.0, %v1394
          %v1396 = vpop.f32.mrb[0].mxu0
          %1397 = vmatprep.mubr.bf16.mxu0 0
          %1398 = vmatmul.mubr.bf16.gmra.mrb[0].mxu0 %v1167
          %v1399 = vpop.f32.mrb[0].mxu0
          %v1400 = vadd.f32 0.0, %v1399
          %v1401 = vpop.f32.mrb[0].mxu0
          %v1402 = vpop.f32.mrb[0].mxu0
          %v1403 = vadd.f32 0.0, %v1402
          %v1404 = vpop.f32.mrb[0].mxu0
          %1405 = vmatprep.mubr.bf16.mxu0 0
          %1406 = vmatmul.mubr.bf16.gmra.mrb[0].mxu0 %v1168
          %v1407 = vpop.f32.mrb[0].mxu0
          %v1408 = vadd.f32 0.0, %v1407
          %v1409 = vpop.f32.mrb[0].mxu0
          %v1410 = vpop.f32.mrb[0].mxu0
          %v1411 = vadd.f32 0.0, %v1410
          %v1412 = vpop.f32.mrb[0].mxu0
          %1413 = vmatprep.mubr.bf16.mxu0 0
          %1414 = vmatmul.mubr.bf16.gmra.mrb[0].mxu0 %v1169
          %v1415 = vpop.f32.mrb[0].mxu0
          %v1416 = vadd.f32 0.0, %v1415
          %v1417 = vpop.f32.mrb[0].mxu0
          %v1418 = vpop.f32.mrb[0].mxu0
          %v1419 = vadd.f32 0.0, %v1418
          %v1420 = vpop.f32.mrb[0].mxu0
          %1421 = vmatprep.mubr.bf16.mxu0 0
          %1422 = vmatmul.mubr.bf16.gmra.mrb[0].mxu0 %v1170
          %v1423 = vpop.f32.mrb[0].mxu0
          %v1424 = vadd.f32 0.0, %v1423
          %v1425 = vpop.f32.mrb[0].mxu0
          %v1426 = vpop.f32.mrb[0].mxu0
          %v1427 = vadd.f32 0.0, %v1426
          %v1428 = vpop.f32.mrb[0].mxu0
          %1429 = vmatprep.mubr.bf16.mxu0 0
          %1430 = vmatmul.mubr.bf16.gmra.mrb[0].mxu0 %v1171
          %v1431 = vpop.f32.mrb[0].mxu0
          %v1432 = vadd.f32 0.0, %v1431
          %v1433 = vpop.f32.mrb[0].mxu0
          %v1434 = vpop.f32.mrb[0].mxu0
          %v1435 = vadd.f32 0.0, %v1434
          %v1436 = vpop.f32.mrb[0].mxu0
          %1437 = vmatprep.mubr.bf16.mxu0 0
          %1438 = vmatmul.mubr.bf16.gmra.mrb[0].mxu0 %v1172
          %v1439 = vpop.f32.mrb[0].mxu0
          %v1440 = vadd.f32 0.0, %v1439
          %v1441 = vpop.f32.mrb[0].mxu0
          %v1442 = vpop.f32.mrb[0].mxu0
          %v1443 = vadd.f32 0.0, %v1442
          %v1444 = vpop.f32.mrb[0].mxu0
          %1445 = vdwg.mxu0
          %v1478 = vunpack.c.l.b16 %v1173
          %v1479 = vunpack.c.l.b16 %v1174
          %v1480 = vunpack.c.l.b16 %v1175
          %v1481 = vunpack.c.l.b16 %v1176
          %v1482 = vunpack.c.l.b16 %v1177
          %v1483 = vunpack.c.l.b16 %v1178
          %v1484 = vunpack.c.l.b16 %v1179
          %v1485 = vunpack.c.l.b16 %v1180
          %v1486 = vunpack.c.l.b16 %v1181
          %v1487 = vunpack.c.l.b16 %v1182
          %v1488 = vunpack.c.l.b16 %v1183
          %v1489 = vunpack.c.l.b16 %v1184
          %v1490 = vunpack.c.l.b16 %v1185
          %v1491 = vunpack.c.l.b16 %v1186
          %v1492 = vunpack.c.l.b16 %v1187
          %v1493 = vunpack.c.l.b16 %v1188
          %v1494 = vunpack.c.l.b16 %v1189
          %v1495 = vunpack.c.l.b16 %v1190
          %v1496 = vunpack.c.l.b16 %v1191
          %v1497 = vunpack.c.l.b16 %v1192
          %v1498 = vunpack.c.l.b16 %v1193
          %v1499 = vunpack.c.l.b16 %v1194
          %v1500 = vunpack.c.l.b16 %v1195
          %v1501 = vunpack.c.l.b16 %v1196
          %v1502 = vunpack.c.l.b16 %v1197
          %v1503 = vunpack.c.l.b16 %v1198
          %v1504 = vunpack.c.l.b16 %v1199
          %v1505 = vunpack.c.l.b16 %v1200
          %v1506 = vunpack.c.l.b16 %v1201
          %v1507 = vunpack.c.l.b16 %v1202
          %v1508 = vunpack.c.l.b16 %v1203
          %v1509 = vunpack.c.l.b16 %v1204
          %v1510 = vpack.c.b16 %v1479, %v1478
          %v1511 = vpack.c.b16 %v1481, %v1480
          %v1512 = vpack.c.b16 %v1483, %v1482
          %v1513 = vpack.c.b16 %v1485, %v1484
          %v1514 = vpack.c.b16 %v1487, %v1486
          %v1515 = vpack.c.b16 %v1489, %v1488
          %v1516 = vpack.c.b16 %v1491, %v1490
          %v1517 = vpack.c.b16 %v1493, %v1492
          %v1518 = vpack.c.b16 %v1495, %v1494
          %v1519 = vpack.c.b16 %v1497, %v1496
          %v1520 = vpack.c.b16 %v1499, %v1498
          %v1521 = vpack.c.b16 %v1501, %v1500
          %v1522 = vpack.c.b16 %v1503, %v1502
          %v1523 = vpack.c.b16 %v1505, %v1504
          %v1524 = vpack.c.b16 %v1507, %v1506
          %v1525 = vpack.c.b16 %v1509, %v1508
          %v1558 = vunpack.c.l.b16 %v1205
          %v1559 = vunpack.c.l.b16 %v1206
          %v1560 = vunpack.c.l.b16 %v1207
          %v1561 = vunpack.c.l.b16 %v1208
          %v1562 = vunpack.c.l.b16 %v1209
          %v1563 = vunpack.c.l.b16 %v1210
          %v1564 = vunpack.c.l.b16 %v1211
          %v1565 = vunpack.c.l.b16 %v1212
          %v1566 = vunpack.c.l.b16 %v1213
          %v1567 = vunpack.c.l.b16 %v1214
          %v1568 = vunpack.c.l.b16 %v1215
          %v1569 = vunpack.c.l.b16 %v1216
          %v1570 = vunpack.c.l.b16 %v1217
          %v1571 = vunpack.c.l.b16 %v1218
          %v1572 = vunpack.c.l.b16 %v1219
          %v1573 = vunpack.c.l.b16 %v1220
          %v1574 = vpack.c.b16 %v1559, %v1558
          %v1575 = vpack.c.b16 %v1561, %v1560
          %v1576 = vpack.c.b16 %v1563, %v1562
          %v1577 = vpack.c.b16 %v1565, %v1564
          %v1578 = vpack.c.b16 %v1567, %v1566
          %v1579 = vpack.c.b16 %v1569, %v1568
          %v1580 = vpack.c.b16 %v1571, %v1570
          %v1581 = vpack.c.b16 %v1573, %v1572
          %1590 = vmatprep.subr.bf16.mxu0 0
          %1591 = vmatpush1.bf16.msra.mxu0 %v1574
          %1592 = vmatprep.subr.bf16.mxu0 0
          %1593 = vmatpush1.bf16.msra.mxu0 %v1575
          %1594 = vmatprep.subr.bf16.mxu0 0
          %1595 = vmatpush1.bf16.msra.mxu0 %v1576
          %1596 = vmatprep.subr.bf16.mxu0 0
          %1597 = vmatpush1.bf16.msra.mxu0 %v1577
          %1598 = vmatprep.subr.bf16.mxu0 0
          %1599 = vmatpush1.bf16.msra.mxu0 %v1578
          %1600 = vmatprep.subr.bf16.mxu0 0
          %1601 = vmatpush1.bf16.msra.mxu0 %v1579
          %1602 = vmatprep.subr.bf16.mxu0 0
          %1603 = vmatpush1.bf16.msra.mxu0 %v1580
          %1604 = vmatprep.subr.bf16.mxu0 0
          %1605 = vmatpush1.bf16.msra.mxu0 %v1581
          %1606 = vmatprep.subr.bf16.mxu0 0
          %1607 = vmatpush1.bf16.msra.mxu0 0
          %1608 = vmatprep.subr.bf16.mxu0 0
          %1609 = vmatpush1.bf16.msra.mxu0 0
          %1610 = vmatprep.subr.bf16.mxu0 0
          %1611 = vmatpush1.bf16.msra.mxu0 0
          %1612 = vmatprep.subr.bf16.mxu0 0
          %1613 = vmatpush1.bf16.msra.mxu0 0
          %1614 = vmatprep.subr.bf16.mxu0 0
          %1615 = vmatpush1.bf16.msra.mxu0 0
          %1616 = vmatprep.subr.bf16.mxu0 0
          %1617 = vmatpush1.bf16.msra.mxu0 0
          %1618 = vmatprep.subr.bf16.mxu0 0
          %1619 = vmatpush1.bf16.msra.mxu0 0
          %1620 = vmatprep.subr.bf16.mxu0 0
          %1621 = vmatpush1.bf16.msra.mxu0 0
          %1622 = vmatprep.mubr.bf16.mxu0 0
          %1623 = vmatmul.mubr.bf16.gmra.mrb[0].mxu0 %v1510
          %v1624 = vpop.f32.mrb[0].mxu0
          %v1625 = vadd.f32 %v1320, %v1624
          %v1626 = vpop.f32.mrb[0].mxu0
          %v1627 = vpop.f32.mrb[0].mxu0
          %v1628 = vadd.f32 %v1323, %v1627
          %v1629 = vpop.f32.mrb[0].mxu0
          %1630 = vmatprep.mubr.bf16.mxu0 0
          %1631 = vmatmul.mubr.bf16.gmra.mrb[0].mxu0 %v1511
          %v1632 = vpop.f32.mrb[0].mxu0
          %v1633 = vadd.f32 %v1328, %v1632
          %v1634 = vpop.f32.mrb[0].mxu0
          %v1635 = vpop.f32.mrb[0].mxu0
          %v1636 = vadd.f32 %v1331, %v1635
          %v1637 = vpop.f32.mrb[0].mxu0
          %1638 = vmatprep.mubr.bf16.mxu0 0
          %1639 = vmatmul.mubr.bf16.gmra.mrb[0].mxu0 %v1512
          %v1640 = vpop.f32.mrb[0].mxu0
          %v1641 = vadd.f32 %v1336, %v1640
          %v1642 = vpop.f32.mrb[0].mxu0
          %v1643 = vpop.f32.mrb[0].mxu0
          %v1644 = vadd.f32 %v1339, %v1643
          %v1645 = vpop.f32.mrb[0].mxu0
          %1646 = vmatprep.mubr.bf16.mxu0 0
          %1647 = vmatmul.mubr.bf16.gmra.mrb[0].mxu0 %v1513
          %v1648 = vpop.f32.mrb[0].mxu0
          %v1649 = vadd.f32 %v1344, %v1648
          %v1650 = vpop.f32.mrb[0].mxu0
          %v1651 = vpop.f32.mrb[0].mxu0
          %v1652 = vadd.f32 %v1347, %v1651
          %v1653 = vpop.f32.mrb[0].mxu0
          %1654 = vmatprep.mubr.bf16.mxu0 0
          %1655 = vmatmul.mubr.bf16.gmra.mrb[0].mxu0 %v1514
          %v1656 = vpop.f32.mrb[0].mxu0
          %v1657 = vadd.f32 %v1352, %v1656
          %v1658 = vpop.f32.mrb[0].mxu0
          %v1659 = vpop.f32.mrb[0].mxu0
          %v1660 = vadd.f32 %v1355, %v1659
          %v1661 = vpop.f32.mrb[0].mxu0
          %1662 = vmatprep.mubr.bf16.mxu0 0
          %1663 = vmatmul.mubr.bf16.gmra.mrb[0].mxu0 %v1515
          %v1664 = vpop.f32.mrb[0].mxu0
          %v1665 = vadd.f32 %v1360, %v1664
          %v1666 = vpop.f32.mrb[0].mxu0
          %v1667 = vpop.f32.mrb[0].mxu0
          %v1668 = vadd.f32 %v1363, %v1667
          %v1669 = vpop.f32.mrb[0].mxu0
          %1670 = vmatprep.mubr.bf16.mxu0 0
          %1671 = vmatmul.mubr.bf16.gmra.mrb[0].mxu0 %v1516
          %v1672 = vpop.f32.mrb[0].mxu0
          %v1673 = vadd.f32 %v1368, %v1672
          %v1674 = vpop.f32.mrb[0].mxu0
          %v1675 = vpop.f32.mrb[0].mxu0
          %v1676 = vadd.f32 %v1371, %v1675
          %v1677 = vpop.f32.mrb[0].mxu0
          %1678 = vmatprep.mubr.bf16.mxu0 0
          %1679 = vmatmul.mubr.bf16.gmra.mrb[0].mxu0 %v1517
          %v1680 = vpop.f32.mrb[0].mxu0
          %v1681 = vadd.f32 %v1376, %v1680
          %v1682 = vpop.f32.mrb[0].mxu0
          %v1683 = vpop.f32.mrb[0].mxu0
          %v1684 = vadd.f32 %v1379, %v1683
          %v1685 = vpop.f32.mrb[0].mxu0
          %1686 = vmatprep.mubr.bf16.mxu0 0
          %1687 = vmatmul.mubr.bf16.gmra.mrb[0].mxu0 %v1518
          %v1688 = vpop.f32.mrb[0].mxu0
          %v1689 = vadd.f32 %v1384, %v1688
          %v1690 = vpop.f32.mrb[0].mxu0
          %v1691 = vpop.f32.mrb[0].mxu0
          %v1692 = vadd.f32 %v1387, %v1691
          %v1693 = vpop.f32.mrb[0].mxu0
          %1694 = vmatprep.mubr.bf16.mxu0 0
          %1695 = vmatmul.mubr.bf16.gmra.mrb[0].mxu0 %v1519
          %v1696 = vpop.f32.mrb[0].mxu0
          %v1697 = vadd.f32 %v1392, %v1696
          %v1698 = vpop.f32.mrb[0].mxu0
          %v1699 = vpop.f32.mrb[0].mxu0
          %v1700 = vadd.f32 %v1395, %v1699
          %v1701 = vpop.f32.mrb[0].mxu0
          %1702 = vmatprep.mubr.bf16.mxu0 0
          %1703 = vmatmul.mubr.bf16.gmra.mrb[0].mxu0 %v1520
          %v1704 = vpop.f32.mrb[0].mxu0
          %v1705 = vadd.f32 %v1400, %v1704
          %v1706 = vpop.f32.mrb[0].mxu0
          %v1707 = vpop.f32.mrb[0].mxu0
          %v1708 = vadd.f32 %v1403, %v1707
          %v1709 = vpop.f32.mrb[0].mxu0
          %1710 = vmatprep.mubr.bf16.mxu0 0
          %1711 = vmatmul.mubr.bf16.gmra.mrb[0].mxu0 %v1521
          %v1712 = vpop.f32.mrb[0].mxu0
          %v1713 = vadd.f32 %v1408, %v1712
          %v1714 = vpop.f32.mrb[0].mxu0
          %v1715 = vpop.f32.mrb[0].mxu0
          %v1716 = vadd.f32 %v1411, %v1715
          %v1717 = vpop.f32.mrb[0].mxu0
          %1718 = vmatprep.mubr.bf16.mxu0 0
          %1719 = vmatmul.mubr.bf16.gmra.mrb[0].mxu0 %v1522
          %v1720 = vpop.f32.mrb[0].mxu0
          %v1721 = vadd.f32 %v1416, %v1720
          %v1722 = vpop.f32.mrb[0].mxu0
          %v1723 = vpop.f32.mrb[0].mxu0
          %v1724 = vadd.f32 %v1419, %v1723
          %v1725 = vpop.f32.mrb[0].mxu0
          %1726 = vmatprep.mubr.bf16.mxu0 0
          %1727 = vmatmul.mubr.bf16.gmra.mrb[0].mxu0 %v1523
          %v1728 = vpop.f32.mrb[0].mxu0
          %v1729 = vadd.f32 %v1424, %v1728
          %v1730 = vpop.f32.mrb[0].mxu0
          %v1731 = vpop.f32.mrb[0].mxu0
          %v1732 = vadd.f32 %v1427, %v1731
          %v1733 = vpop.f32.mrb[0].mxu0
          %1734 = vmatprep.mubr.bf16.mxu0 0
          %1735 = vmatmul.mubr.bf16.gmra.mrb[0].mxu0 %v1524
          %v1736 = vpop.f32.mrb[0].mxu0
          %v1737 = vadd.f32 %v1432, %v1736
          %v1738 = vpop.f32.mrb[0].mxu0
          %v1739 = vpop.f32.mrb[0].mxu0
          %v1740 = vadd.f32 %v1435, %v1739
          %v1741 = vpop.f32.mrb[0].mxu0
          %1742 = vmatprep.mubr.bf16.mxu0 0
          %1743 = vmatmul.mubr.bf16.gmra.mrb[0].mxu0 %v1525
          %v1744 = vpop.f32.mrb[0].mxu0
          %v1745 = vadd.f32 %v1440, %v1744
          %v1746 = vpop.f32.mrb[0].mxu0
          %v1747 = vpop.f32.mrb[0].mxu0
          %v1748 = vadd.f32 %v1443, %v1747
          %v1749 = vpop.f32.mrb[0].mxu0
          %1750 = vdwg.mxu0
          %v1751 = vld [vmem:[%s5] sm:$0x1]
          %v1753 = vlaneseq
          %v1754 = vshrl.u32 %v1753, 7
          %v1755 = vsub.s32 0, %v1754
          %v1756 = vrot.slane %v1751, %v1755
          %v1758 = vadd.f32 %v1625, %v1756
          %v1759 = vadd.f32 %v1628, %v1756
          %v1760 = vadd.f32 %v1633, %v1756
          %v1761 = vadd.f32 %v1636, %v1756
          %v1762 = vadd.f32 %v1641, %v1756
          %v1763 = vadd.f32 %v1644, %v1756
          %v1764 = vadd.f32 %v1649, %v1756
          %v1765 = vadd.f32 %v1652, %v1756
          %v1766 = vadd.f32 %v1657, %v1756
          %v1767 = vadd.f32 %v1660, %v1756
          %v1768 = vadd.f32 %v1665, %v1756
          %v1769 = vadd.f32 %v1668, %v1756
          %v1770 = vadd.f32 %v1673, %v1756
          %v1771 = vadd.f32 %v1676, %v1756
          %v1772 = vadd.f32 %v1681, %v1756
          %v1773 = vadd.f32 %v1684, %v1756
          %v1774 = vadd.f32 %v1689, %v1756
          %v1775 = vadd.f32 %v1692, %v1756
          %v1776 = vadd.f32 %v1697, %v1756
          %v1777 = vadd.f32 %v1700, %v1756
          %v1778 = vadd.f32 %v1705, %v1756
          %v1779 = vadd.f32 %v1708, %v1756
          %v1780 = vadd.f32 %v1713, %v1756
          %v1781 = vadd.f32 %v1716, %v1756
          %v1782 = vadd.f32 %v1721, %v1756
          %v1783 = vadd.f32 %v1724, %v1756
          %v1784 = vadd.f32 %v1729, %v1756
          %v1785 = vadd.f32 %v1732, %v1756
          %v1786 = vadd.f32 %v1737, %v1756
          %v1787 = vadd.f32 %v1740, %v1756
          %v1788 = vadd.f32 %v1745, %v1756
          %v1789 = vadd.f32 %v1748, %v1756
          %1790 = vst [vmem:[%s473] sm:$0xff] %v1758
          %1791 = vst [vmem:[%s473 + $0x8] sm:$0xff] %v1759
          %1792 = vst [vmem:[%s473 + $0x10] sm:$0xff] %v1760
          %1793 = vst [vmem:[%s473 + $0x18] sm:$0xff] %v1761
          %1794 = vst [vmem:[%s473 + $0x20] sm:$0xff] %v1762
          %1795 = vst [vmem:[%s473 + $0x28] sm:$0xff] %v1763
          %1796 = vst [vmem:[%s473 + $0x30] sm:$0xff] %v1764
          %1797 = vst [vmem:[%s473 + $0x38] sm:$0xff] %v1765
          %1798 = vst [vmem:[%s473 + $0x40] sm:$0xff] %v1766
          %1799 = vst [vmem:[%s473 + $0x48] sm:$0xff] %v1767
          %1800 = vst [vmem:[%s473 + $0x50] sm:$0xff] %v1768
          %1801 = vst [vmem:[%s473 + $0x58] sm:$0xff] %v1769
          %1802 = vst [vmem:[%s473 + $0x60] sm:$0xff] %v1770
          %1803 = vst [vmem:[%s473 + $0x68] sm:$0xff] %v1771
          %1804 = vst [vmem:[%s473 + $0x70] sm:$0xff] %v1772
          %1805 = vst [vmem:[%s473 + $0x78] sm:$0xff] %v1773
          %1806 = vst [vmem:[%s473 + $0x80] sm:$0xff] %v1774
          %1807 = vst [vmem:[%s473 + $0x88] sm:$0xff] %v1775
          %1808 = vst [vmem:[%s473 + $0x90] sm:$0xff] %v1776
          %1809 = vst [vmem:[%s473 + $0x98] sm:$0xff] %v1777
          %1810 = vst [vmem:[%s473 + $0xa0] sm:$0xff] %v1778
          %1811 = vst [vmem:[%s473 + $0xa8] sm:$0xff] %v1779
          %1812 = vst [vmem:[%s473 + $0xb0] sm:$0xff] %v1780
          %1813 = vst [vmem:[%s473 + $0xb8] sm:$0xff] %v1781
          %1814 = vst [vmem:[%s473 + $0xc0] sm:$0xff] %v1782
          %1815 = vst [vmem:[%s473 + $0xc8] sm:$0xff] %v1783
          %1816 = vst [vmem:[%s473 + $0xd0] sm:$0xff] %v1784
          %1817 = vst [vmem:[%s473 + $0xd8] sm:$0xff] %v1785
          %1818 = vst [vmem:[%s473 + $0xe0] sm:$0xff] %v1786
          %1819 = vst [vmem:[%s473 + $0xe8] sm:$0xff] %v1787
          %1820 = vst [vmem:[%s473 + $0xf0] sm:$0xff] %v1788
          %1821 = vst [vmem:[%s473 + $0xf8] sm:$0xff] %v1789
        $region90: #{graphsage_second_forward.1} parent=77 // pred_fallthru
          _
        %s1822 = smul.u32 32, %s21
        %p1823 = scmp.lt.s32.totalorder %s1822, 63
        %s1824 = scalar_select %p1823, %s1822, 63
        %s1825 = smul.addr %s1824, 8
        %s1826 = scalar_lea.vmem %s6, %s1825
        // Predicated region
        $region91: #{graphsage_second_forward.1} parent=77 // pred_check
          %p1827 = pneg %p190
        $region92: #{graphsage_second_forward.1} parent=77 // pred_check_branch
          %1829 = sbr.rel (%p1827) target = $region94
        $region93: #{graphsage_second_forward.1} parent=77 // pred_region
          %s1830 = smul.u32 32, %s21
        $region94: #{graphsage_second_forward.1} parent=77 // pred_fallthru
          _
      $region78: #{graphsage_second_forward.1} parent=5 // pred_fallthru
        _
      %p1831 = scmp.le.s32.totalorder 2, %s12
      // Predicated region
      $region95: #{graphsage_second_forward.1} parent=5 // pred_check
        %p1832 = pneg %p1831
      $region96: #{graphsage_second_forward.1} parent=5 // pred_check_branch
        %1834 = sbr.rel (%p1832) target = $region98
      $region97: #{graphsage_second_forward.1} parent=5 // pred_region
        %s1835 = ssub.s32 %s12, 2
        // Predicated region
        $region99: #{graphsage_second_forward.1} parent=97 // pred_check
          %p1836 = pneg %p196
        $region100: #{graphsage_second_forward.1} parent=97 // pred_check_branch
          %1838 = sbr.rel (%p1836) target = $region102
        $region101: #{graphsage_second_forward.1} parent=97 // pred_region
          %s1839 = smul.u32 32, %s23
          %p1840 = scmp.lt.s32.totalorder %s1839, 63
          %s1841 = scalar_select %p1840, %s1839, 63
          %s1842 = smul.addr %s1841, 8
          %s1843 = scalar_lea.vmem %s6, %s1842
        $region102: #{graphsage_second_forward.1} parent=97 // pred_fallthru
          _
      $region98: #{graphsage_second_forward.1} parent=5 // pred_fallthru
        _
    $region6: #{graphsage_second_forward.1} parent=1 // loop_footer
      %s16 = sadd.s32 1, %s12
    $region7: #{graphsage_second_forward.1} parent=1 // loop_footer_branch
      %11 = sbr.rel target = $region3
    $region8: #{graphsage_second_forward.1} parent=1 // loop_exit
      _

</llo_original>
